<compile_context>
chip_gen: v5e
topology: v5e:2x2
jax: 0.10.0
libtpu: 0.0.40
codegen_flags: <defaults>
</compile_context>

<pallas_src>
import functools

import jax
import jax.numpy as jnp
from jax.experimental import pallas as pl
from jax.experimental.pallas import tpu as pltpu


def _attention_kernel(x_ref, wqkv_ref, wproj_ref, bias_ref, o_ref,
                      qkv_ref, ctx_ref, *, heads, head_dim, dim,
                      compute_dtype):
    C, D, H = dim, head_dim, heads

    x = x_ref[0]                                                  # (N, C) bf16

    # Fused QKV projection: one lane-dense MXU matmul, f32 accumulation.
    # The softmax scale is already folded into the Q columns of the weight.
    qkv_f32 = jnp.dot(x, wqkv_ref[...],
                      preferred_element_type=jnp.float32)         # (N, 3C) f32

    # Stage once as bf16 scratch: the head loop below slices this compact
    # VMEM buffer instead of keeping the large f32 value live across the
    # fully unrolled loop (halves spill ld/st traffic and vreg pressure).
    qkv_ref[...] = qkv_f32.astype(compute_dtype)

    # Static head loop: all slices are static lane slices; each head's result
    # is stored to the ctx scratch immediately, so per-head intermediates do
    # not stay live across iterations.
    for h in range(H):
        lo = h * D
        q = qkv_ref[:, lo:lo + D]                  # (N, D) bf16, pre-scaled
        k = qkv_ref[:, C + lo:C + lo + D]          # (N, D) bf16
        v = qkv_ref[:, 2 * C + lo:2 * C + lo + D]  # (N, D) bf16

        # scores = q_scaled @ k^T, contracting the head dim (no materialized
        # transpose of k).
        s = jax.lax.dot_general(q, k, (((1,), (1,)), ((), ())),
                                preferred_element_type=jnp.float32)   # (N, N)

        # Numerically stable softmax, all in f32 (keep f32 on v5e: no bf16
        # VPU/EUP there; on v6e/v7x a bf16 exp is possible if EUP ever binds).
        s = s - jnp.max(s, axis=-1, keepdims=True)
        p = jnp.exp(s)
        attn = p * pl.reciprocal(jnp.sum(p, axis=-1, keepdims=True),
                                 approx=True)

        ctx = jnp.dot(attn.astype(compute_dtype), v,
                      preferred_element_type=jnp.float32)             # (N, D)
        ctx_ref[:, lo:lo + D] = ctx.astype(ctx_ref.dtype)

    # Fused output projection at full contraction depth C, plus bias.
    out = jnp.dot(ctx_ref[...], wproj_ref[...],
                  preferred_element_type=jnp.float32)                 # (N, C)
    out = out + bias_ref[...]                                         # (1, C) broadcast
    o_ref[0] = out.astype(o_ref.dtype)


def prepare_attention_params(w_qkv, w_proj, b_proj, num_heads,
                             compute_dtype=jnp.bfloat16):
    """One-time weight transform (cache the result across forward calls).

    w_qkv:  (3C, C)  torch nn.Linear weight (qkv_bias=False)
    w_proj: (C, C)   torch nn.Linear weight
    b_proj: (C,)     torch nn.Linear bias

    Returns lane-dense, pre-transposed, bf16-cast weights with the softmax
    scale folded into the Q output columns of W_qkv^T.
    """
    three_c, C = w_qkv.shape
    assert three_c == 3 * C
    D = C // num_heads
    scale = float(D) ** -0.5

    # y = x @ W^T -> pass transposed weights.  Column h*D + d of the q/k/v
    # block corresponds to (head h, dim d), matching the torch
    # reshape(B, N, 3, H, D).permute(...) exactly.
    w_qkv_t = jnp.transpose(w_qkv).astype(jnp.float32)           # (C, 3C)
    # Fold the softmax scale into the Q block (first C output columns),
    # in f32, before the bf16 cast.
    w_qkv_t = w_qkv_t.at[:, :C].multiply(scale).astype(compute_dtype)
    w_proj_t = jnp.transpose(w_proj).astype(compute_dtype)       # (C, C)
    bias = b_proj.reshape(1, C).astype(jnp.float32)              # (1, C)
    return w_qkv_t, w_proj_t, bias


def attention_forward(x, params, num_heads, compute_dtype=jnp.bfloat16):
    """Forward of the Attention module.

    x:      (B, N, C)
    params: output of `prepare_attention_params`.
    """
    B, N, C = x.shape
    H = num_heads
    D = C // H
    w_qkv_t, w_proj_t, bias = params

    x_c = x.astype(compute_dtype)

    kernel = functools.partial(
        _attention_kernel, heads=H, head_dim=D, dim=C,
        compute_dtype=compute_dtype)

    return pl.pallas_call(
        kernel,
        out_shape=jax.ShapeDtypeStruct((B, N, C), x.dtype),
        grid_spec=pltpu.PrefetchScalarGridSpec(
            num_scalar_prefetch=0,
            grid=(B,),
            in_specs=[
                pl.BlockSpec((1, N, C), lambda b: (b, 0, 0)),     # x, per batch
                # Grid-invariant operands: constant index maps -> DMA'd once;
                # single-buffered (the second pipeline buffer would be pure
                # VMEM waste — matters most on v7x's 64 MiB VMEM).
                pl.BlockSpec((C, 3 * C), lambda b: (0, 0),
                             pipeline_mode=pl.Buffered(1)),        # W_qkv^T (scaled Q cols)
                pl.BlockSpec((C, C), lambda b: (0, 0),
                             pipeline_mode=pl.Buffered(1)),        # W_proj^T
                pl.BlockSpec((1, C), lambda b: (0, 0),
                             pipeline_mode=pl.Buffered(1)),        # proj bias
            ],
            out_specs=pl.BlockSpec((1, N, C), lambda b: (b, 0, 0)),
            scratch_shapes=[
                pltpu.VMEM((N, 3 * C), compute_dtype),   # staged bf16 qkv
                pltpu.VMEM((N, C), compute_dtype),       # concatenated ctx
            ],
        ),
        compiler_params=pltpu.CompilerParams(
            dimension_semantics=("parallel",),
            # Explicit budget: safe on v5e/v6e (128 MiB physical) and leaves
            # headroom under v7x's 64 MiB physical VMEM.
            vmem_limit_bytes=48 * 1024 * 1024),
    )(x_c, w_qkv_t, w_proj_t, bias)


def attention_reference(x, w_qkv, w_proj, b_proj, num_heads):
    """Pure-JAX f32 reference matching the PyTorch module exactly."""
    B, N, C = x.shape
    H = num_heads
    D = C // H
    scale = float(D) ** -0.5
    qkv = x @ w_qkv.T                                        # (B, N, 3C)
    qkv = qkv.reshape(B, N, 3, H, D).transpose(2, 0, 3, 1, 4)
    q, k, v = qkv[0], qkv[1], qkv[2]                         # (B, H, N, D)
    attn = jnp.einsum('bhnd,bhmd->bhnm', q, k) * scale
    attn = jax.nn.softmax(attn, axis=-1)
    # attn_drop / proj_drop have p=0.0 -> identity in eval; omitted.
    ctx = jnp.einsum('bhnm,bhmd->bhnd', attn, v)             # (B, H, N, D)
    ctx = ctx.transpose(0, 2, 1, 3).reshape(B, N, C)
    return ctx @ w_proj.T + b_proj


if __name__ == "__main__":
    B, N, C = 2, 16, 64
    num_heads = 8

    key = jax.random.PRNGKey(0)
    kx, kqkv, kp, kb = jax.random.split(key, 4)

    x = jax.random.normal(kx, (B, N, C), dtype=jnp.float32)
    # Deterministic synthetic parameters (torch Linear shapes: (out, in)).
    w_qkv = 0.05 * jax.random.normal(kqkv, (3 * C, C), dtype=jnp.float32)  # qkv_bias=False
    w_proj = 0.05 * jax.random.normal(kp, (C, C), dtype=jnp.float32)
    b_proj = 0.05 * jax.random.normal(kb, (C,), dtype=jnp.float32)

    # One-time weight transform (cache this across forward calls).
    params = prepare_attention_params(w_qkv, w_proj, b_proj, num_heads)

    out = attention_forward(x, params, num_heads)
    out = jax.block_until_ready(out)

    ref = attention_reference(x, w_qkv, w_proj, b_proj, num_heads)
    assert out.shape == (B, N, C)
    # bf16 MXU inputs with f32 accumulation (+ approx reciprocal, scale folded
    # into bf16 weights) -> loosened tolerance vs the f32 reference.
    # NOTE: these toy shapes (N=16, C=64, D=8) validate numerics only; real
    # performance should be benchmarked at ViT scale (N~197/256, C>=768).
    assert jnp.allclose(out, ref, atol=2e-2, rtol=2e-2), "mismatch vs reference"

    print("KERNEL_OK")
</pallas_src>

<mosaic_0001>
module attributes {stable_mosaic.version = 11 : i64} {
  func.func @_attention_kernel(%arg0: i32, %arg1: memref<1x16x64xbf16, #tpu.memory_space<vmem>>, %arg2: memref<64x192xbf16, #tpu.memory_space<vmem>>, %arg3: memref<64x64xbf16, #tpu.memory_space<vmem>>, %arg4: memref<1x64xf32, #tpu.memory_space<vmem>>, %arg5: memref<1x16x64xf32, #tpu.memory_space<vmem>>, %arg6: memref<16x192xbf16, #tpu.memory_space<vmem>>, %arg7: memref<16x64xbf16, #tpu.memory_space<vmem>>) attributes {dimension_semantics = [#tpu.dimension_semantics<parallel>], iteration_bounds = array<i64: 2>, scalar_prefetch = 0 : i64, scratch_operands = 2 : i64, tpu.core_type = #tpu.core_type<tc>, window_params = [{transform_indices = @transform_0, window_bounds = array<i64: 1, 16, 64>}, {pipeline_mode = #tpu.pipeline_mode<synchronous>, transform_indices = @transform_1, window_bounds = array<i64: 64, 192>}, {pipeline_mode = #tpu.pipeline_mode<synchronous>, transform_indices = @transform_2, window_bounds = array<i64: 64, 64>}, {pipeline_mode = #tpu.pipeline_mode<synchronous>, transform_indices = @transform_3, window_bounds = array<i64: 1, 64>}, {transform_indices = @transform_4, window_bounds = array<i64: 1, 16, 64>}]} {
    %c0 = arith.constant 0 : index
    %c0_0 = arith.constant 0 : index
    %c0_1 = arith.constant 0 : index
    %0 = vector.load %arg1[%c0, %c0_0, %c0_1] : memref<1x16x64xbf16, #tpu.memory_space<vmem>>, vector<1x16x64xbf16>
    %1 = vector.shape_cast %0 : vector<1x16x64xbf16> to vector<16x64xbf16>
    %c0_2 = arith.constant 0 : index
    %c0_3 = arith.constant 0 : index
    %2 = vector.load %arg2[%c0_2, %c0_3] : memref<64x192xbf16, #tpu.memory_space<vmem>>, vector<64x192xbf16>
    %cst = arith.constant dense<0.000000e+00> : vector<16x192xf32>
    %3 = tpu.matmul %1, %2, %cst {dimension_numbers = #tpu.dot_dimension_numbers<[1], [0], [0], [1], [0, 0, 1, 1], [], []>} : vector<16x64xbf16>, vector<64x192xbf16>, vector<16x192xf32> -> vector<16x192xf32>
    %4 = arith.truncf %3 : vector<16x192xf32> to vector<16x192xbf16>
    %c0_4 = arith.constant 0 : index
    %c0_5 = arith.constant 0 : index
    %5 = vector.load %arg6[%c0_4, %c0_5] : memref<16x192xbf16, #tpu.memory_space<vmem>>, vector<16x192xbf16>
    tpu.vector_store %arg6[%c0_4, %c0_5], %4 {strides = array<i32>} : memref<16x192xbf16, #tpu.memory_space<vmem>>, vector<16x192xbf16>,
    %c0_6 = arith.constant 0 : index
    %c0_7 = arith.constant 0 : index
    %6 = vector.load %arg6[%c0_6, %c0_7] : memref<16x192xbf16, #tpu.memory_space<vmem>>, vector<16x8xbf16>
    %c0_8 = arith.constant 0 : index
    %c64 = arith.constant 64 : index
    %7 = vector.load %arg6[%c0_8, %c64] : memref<16x192xbf16, #tpu.memory_space<vmem>>, vector<16x8xbf16>
    %c0_9 = arith.constant 0 : index
    %c128 = arith.constant 128 : index
    %8 = vector.load %arg6[%c0_9, %c128] : memref<16x192xbf16, #tpu.memory_space<vmem>>, vector<16x8xbf16>
    %cst_10 = arith.constant dense<0.000000e+00> : vector<16x16xf32>
    %9 = tpu.matmul %6, %7, %cst_10 {dimension_numbers = #tpu.dot_dimension_numbers<[1], [1], [0], [0], [0, 0, 1, 0], [], []>} : vector<16x8xbf16>, vector<16x8xbf16>, vector<16x16xf32> -> vector<16x16xf32>
    %cst_11 = arith.constant dense<0xFF800000> : vector<16xf32>
    %10 = vector.multi_reduction <maximumf>, %9, %cst_11 [1] : vector<16x16xf32> to vector<16xf32>
    %11 = vector.shape_cast %10 : vector<16xf32> to vector<16x1xf32>
    %12 = vector.broadcast %11 : vector<16x1xf32> to vector<16x16xf32>
    %13 = arith.subf %9, %12 : vector<16x16xf32>
    %14 = math.exp %13 : vector<16x16xf32>
    %cst_12 = arith.constant dense<0.000000e+00> : vector<16xf32>
    %15 = vector.multi_reduction <add>, %14, %cst_12 [1] : vector<16x16xf32> to vector<16xf32>
    %16 = vector.shape_cast %15 : vector<16xf32> to vector<16x1xf32>
    %17 = tpu.reciprocal %16 {approx = true} : vector<16x1xf32> -> vector<16x1xf32>
    %18 = vector.broadcast %17 : vector<16x1xf32> to vector<16x16xf32>
    %19 = arith.mulf %14, %18 : vector<16x16xf32>
    %20 = arith.truncf %19 : vector<16x16xf32> to vector<16x16xbf16>
    %cst_13 = arith.constant dense<0.000000e+00> : vector<16x8xf32>
    %21 = tpu.matmul %20, %8, %cst_13 {dimension_numbers = #tpu.dot_dimension_numbers<[1], [0], [0], [1], [0, 0, 1, 1], [], []>} : vector<16x16xbf16>, vector<16x8xbf16>, vector<16x8xf32> -> vector<16x8xf32>
    %22 = arith.truncf %21 : vector<16x8xf32> to vector<16x8xbf16>
    %c0_14 = arith.constant 0 : index
    %c0_15 = arith.constant 0 : index
    %23 = vector.load %arg7[%c0_14, %c0_15] : memref<16x64xbf16, #tpu.memory_space<vmem>>, vector<16x8xbf16>
    tpu.vector_store %arg7[%c0_14, %c0_15], %22 {strides = array<i32>} : memref<16x64xbf16, #tpu.memory_space<vmem>>, vector<16x8xbf16>,
    %c0_16 = arith.constant 0 : index
    %c8 = arith.constant 8 : index
    %24 = vector.load %arg6[%c0_16, %c8] : memref<16x192xbf16, #tpu.memory_space<vmem>>, vector<16x8xbf16>
    %c0_17 = arith.constant 0 : index
    %c72 = arith.constant 72 : index
    %25 = vector.load %arg6[%c0_17, %c72] : memref<16x192xbf16, #tpu.memory_space<vmem>>, vector<16x8xbf16>
    %c0_18 = arith.constant 0 : index
    %c136 = arith.constant 136 : index
    %26 = vector.load %arg6[%c0_18, %c136] : memref<16x192xbf16, #tpu.memory_space<vmem>>, vector<16x8xbf16>
    %cst_19 = arith.constant dense<0.000000e+00> : vector<16x16xf32>
    %27 = tpu.matmul %24, %25, %cst_19 {dimension_numbers = #tpu.dot_dimension_numbers<[1], [1], [0], [0], [0, 0, 1, 0], [], []>} : vector<16x8xbf16>, vector<16x8xbf16>, vector<16x16xf32> -> vector<16x16xf32>
    %cst_20 = arith.constant dense<0xFF800000> : vector<16xf32>
    %28 = vector.multi_reduction <maximumf>, %27, %cst_20 [1] : vector<16x16xf32> to vector<16xf32>
    %29 = vector.shape_cast %28 : vector<16xf32> to vector<16x1xf32>
    %30 = vector.broadcast %29 : vector<16x1xf32> to vector<16x16xf32>
    %31 = arith.subf %27, %30 : vector<16x16xf32>
    %32 = math.exp %31 : vector<16x16xf32>
    %cst_21 = arith.constant dense<0.000000e+00> : vector<16xf32>
    %33 = vector.multi_reduction <add>, %32, %cst_21 [1] : vector<16x16xf32> to vector<16xf32>
    %34 = vector.shape_cast %33 : vector<16xf32> to vector<16x1xf32>
    %35 = tpu.reciprocal %34 {approx = true} : vector<16x1xf32> -> vector<16x1xf32>
    %36 = vector.broadcast %35 : vector<16x1xf32> to vector<16x16xf32>
    %37 = arith.mulf %32, %36 : vector<16x16xf32>
    %38 = arith.truncf %37 : vector<16x16xf32> to vector<16x16xbf16>
    %cst_22 = arith.constant dense<0.000000e+00> : vector<16x8xf32>
    %39 = tpu.matmul %38, %26, %cst_22 {dimension_numbers = #tpu.dot_dimension_numbers<[1], [0], [0], [1], [0, 0, 1, 1], [], []>} : vector<16x16xbf16>, vector<16x8xbf16>, vector<16x8xf32> -> vector<16x8xf32>
    %40 = arith.truncf %39 : vector<16x8xf32> to vector<16x8xbf16>
    %c0_23 = arith.constant 0 : index
    %c8_24 = arith.constant 8 : index
    %41 = vector.load %arg7[%c0_23, %c8_24] : memref<16x64xbf16, #tpu.memory_space<vmem>>, vector<16x8xbf16>
    tpu.vector_store %arg7[%c0_23, %c8_24], %40 {strides = array<i32>} : memref<16x64xbf16, #tpu.memory_space<vmem>>, vector<16x8xbf16>,
    %c0_25 = arith.constant 0 : index
    %c16 = arith.constant 16 : index
    %42 = vector.load %arg6[%c0_25, %c16] : memref<16x192xbf16, #tpu.memory_space<vmem>>, vector<16x8xbf16>
    %c0_26 = arith.constant 0 : index
    %c80 = arith.constant 80 : index
    %43 = vector.load %arg6[%c0_26, %c80] : memref<16x192xbf16, #tpu.memory_space<vmem>>, vector<16x8xbf16>
    %c0_27 = arith.constant 0 : index
    %c144 = arith.constant 144 : index
    %44 = vector.load %arg6[%c0_27, %c144] : memref<16x192xbf16, #tpu.memory_space<vmem>>, vector<16x8xbf16>
    %cst_28 = arith.constant dense<0.000000e+00> : vector<16x16xf32>
    %45 = tpu.matmul %42, %43, %cst_28 {dimension_numbers = #tpu.dot_dimension_numbers<[1], [1], [0], [0], [0, 0, 1, 0], [], []>} : vector<16x8xbf16>, vector<16x8xbf16>, vector<16x16xf32> -> vector<16x16xf32>
    %cst_29 = arith.constant dense<0xFF800000> : vector<16xf32>
    %46 = vector.multi_reduction <maximumf>, %45, %cst_29 [1] : vector<16x16xf32> to vector<16xf32>
    %47 = vector.shape_cast %46 : vector<16xf32> to vector<16x1xf32>
    %48 = vector.broadcast %47 : vector<16x1xf32> to vector<16x16xf32>
    %49 = arith.subf %45, %48 : vector<16x16xf32>
    %50 = math.exp %49 : vector<16x16xf32>
    %cst_30 = arith.constant dense<0.000000e+00> : vector<16xf32>
    %51 = vector.multi_reduction <add>, %50, %cst_30 [1] : vector<16x16xf32> to vector<16xf32>
    %52 = vector.shape_cast %51 : vector<16xf32> to vector<16x1xf32>
    %53 = tpu.reciprocal %52 {approx = true} : vector<16x1xf32> -> vector<16x1xf32>
    %54 = vector.broadcast %53 : vector<16x1xf32> to vector<16x16xf32>
    %55 = arith.mulf %50, %54 : vector<16x16xf32>
    %56 = arith.truncf %55 : vector<16x16xf32> to vector<16x16xbf16>
    %cst_31 = arith.constant dense<0.000000e+00> : vector<16x8xf32>
    %57 = tpu.matmul %56, %44, %cst_31 {dimension_numbers = #tpu.dot_dimension_numbers<[1], [0], [0], [1], [0, 0, 1, 1], [], []>} : vector<16x16xbf16>, vector<16x8xbf16>, vector<16x8xf32> -> vector<16x8xf32>
    %58 = arith.truncf %57 : vector<16x8xf32> to vector<16x8xbf16>
    %c0_32 = arith.constant 0 : index
    %c16_33 = arith.constant 16 : index
    %59 = vector.load %arg7[%c0_32, %c16_33] : memref<16x64xbf16, #tpu.memory_space<vmem>>, vector<16x8xbf16>
    tpu.vector_store %arg7[%c0_32, %c16_33], %58 {strides = array<i32>} : memref<16x64xbf16, #tpu.memory_space<vmem>>, vector<16x8xbf16>,
    %c0_34 = arith.constant 0 : index
    %c24 = arith.constant 24 : index
    %60 = vector.load %arg6[%c0_34, %c24] : memref<16x192xbf16, #tpu.memory_space<vmem>>, vector<16x8xbf16>
    %c0_35 = arith.constant 0 : index
    %c88 = arith.constant 88 : index
    %61 = vector.load %arg6[%c0_35, %c88] : memref<16x192xbf16, #tpu.memory_space<vmem>>, vector<16x8xbf16>
    %c0_36 = arith.constant 0 : index
    %c152 = arith.constant 152 : index
    %62 = vector.load %arg6[%c0_36, %c152] : memref<16x192xbf16, #tpu.memory_space<vmem>>, vector<16x8xbf16>
    %cst_37 = arith.constant dense<0.000000e+00> : vector<16x16xf32>
    %63 = tpu.matmul %60, %61, %cst_37 {dimension_numbers = #tpu.dot_dimension_numbers<[1], [1], [0], [0], [0, 0, 1, 0], [], []>} : vector<16x8xbf16>, vector<16x8xbf16>, vector<16x16xf32> -> vector<16x16xf32>
    %cst_38 = arith.constant dense<0xFF800000> : vector<16xf32>
    %64 = vector.multi_reduction <maximumf>, %63, %cst_38 [1] : vector<16x16xf32> to vector<16xf32>
    %65 = vector.shape_cast %64 : vector<16xf32> to vector<16x1xf32>
    %66 = vector.broadcast %65 : vector<16x1xf32> to vector<16x16xf32>
    %67 = arith.subf %63, %66 : vector<16x16xf32>
    %68 = math.exp %67 : vector<16x16xf32>
    %cst_39 = arith.constant dense<0.000000e+00> : vector<16xf32>
    %69 = vector.multi_reduction <add>, %68, %cst_39 [1] : vector<16x16xf32> to vector<16xf32>
    %70 = vector.shape_cast %69 : vector<16xf32> to vector<16x1xf32>
    %71 = tpu.reciprocal %70 {approx = true} : vector<16x1xf32> -> vector<16x1xf32>
    %72 = vector.broadcast %71 : vector<16x1xf32> to vector<16x16xf32>
    %73 = arith.mulf %68, %72 : vector<16x16xf32>
    %74 = arith.truncf %73 : vector<16x16xf32> to vector<16x16xbf16>
    %cst_40 = arith.constant dense<0.000000e+00> : vector<16x8xf32>
    %75 = tpu.matmul %74, %62, %cst_40 {dimension_numbers = #tpu.dot_dimension_numbers<[1], [0], [0], [1], [0, 0, 1, 1], [], []>} : vector<16x16xbf16>, vector<16x8xbf16>, vector<16x8xf32> -> vector<16x8xf32>
    %76 = arith.truncf %75 : vector<16x8xf32> to vector<16x8xbf16>
    %c0_41 = arith.constant 0 : index
    %c24_42 = arith.constant 24 : index
    %77 = vector.load %arg7[%c0_41, %c24_42] : memref<16x64xbf16, #tpu.memory_space<vmem>>, vector<16x8xbf16>
    tpu.vector_store %arg7[%c0_41, %c24_42], %76 {strides = array<i32>} : memref<16x64xbf16, #tpu.memory_space<vmem>>, vector<16x8xbf16>,
    %c0_43 = arith.constant 0 : index
    %c32 = arith.constant 32 : index
    %78 = vector.load %arg6[%c0_43, %c32] : memref<16x192xbf16, #tpu.memory_space<vmem>>, vector<16x8xbf16>
    %c0_44 = arith.constant 0 : index
    %c96 = arith.constant 96 : index
    %79 = vector.load %arg6[%c0_44, %c96] : memref<16x192xbf16, #tpu.memory_space<vmem>>, vector<16x8xbf16>
    %c0_45 = arith.constant 0 : index
    %c160 = arith.constant 160 : index
    %80 = vector.load %arg6[%c0_45, %c160] : memref<16x192xbf16, #tpu.memory_space<vmem>>, vector<16x8xbf16>
    %cst_46 = arith.constant dense<0.000000e+00> : vector<16x16xf32>
    %81 = tpu.matmul %78, %79, %cst_46 {dimension_numbers = #tpu.dot_dimension_numbers<[1], [1], [0], [0], [0, 0, 1, 0], [], []>} : vector<16x8xbf16>, vector<16x8xbf16>, vector<16x16xf32> -> vector<16x16xf32>
    %cst_47 = arith.constant dense<0xFF800000> : vector<16xf32>
    %82 = vector.multi_reduction <maximumf>, %81, %cst_47 [1] : vector<16x16xf32> to vector<16xf32>
    %83 = vector.shape_cast %82 : vector<16xf32> to vector<16x1xf32>
    %84 = vector.broadcast %83 : vector<16x1xf32> to vector<16x16xf32>
    %85 = arith.subf %81, %84 : vector<16x16xf32>
    %86 = math.exp %85 : vector<16x16xf32>
    %cst_48 = arith.constant dense<0.000000e+00> : vector<16xf32>
    %87 = vector.multi_reduction <add>, %86, %cst_48 [1] : vector<16x16xf32> to vector<16xf32>
    %88 = vector.shape_cast %87 : vector<16xf32> to vector<16x1xf32>
    %89 = tpu.reciprocal %88 {approx = true} : vector<16x1xf32> -> vector<16x1xf32>
    %90 = vector.broadcast %89 : vector<16x1xf32> to vector<16x16xf32>
    %91 = arith.mulf %86, %90 : vector<16x16xf32>
    %92 = arith.truncf %91 : vector<16x16xf32> to vector<16x16xbf16>
    %cst_49 = arith.constant dense<0.000000e+00> : vector<16x8xf32>
    %93 = tpu.matmul %92, %80, %cst_49 {dimension_numbers = #tpu.dot_dimension_numbers<[1], [0], [0], [1], [0, 0, 1, 1], [], []>} : vector<16x16xbf16>, vector<16x8xbf16>, vector<16x8xf32> -> vector<16x8xf32>
    %94 = arith.truncf %93 : vector<16x8xf32> to vector<16x8xbf16>
    %c0_50 = arith.constant 0 : index
    %c32_51 = arith.constant 32 : index
    %95 = vector.load %arg7[%c0_50, %c32_51] : memref<16x64xbf16, #tpu.memory_space<vmem>>, vector<16x8xbf16>
    tpu.vector_store %arg7[%c0_50, %c32_51], %94 {strides = array<i32>} : memref<16x64xbf16, #tpu.memory_space<vmem>>, vector<16x8xbf16>,
    %c0_52 = arith.constant 0 : index
    %c40 = arith.constant 40 : index
    %96 = vector.load %arg6[%c0_52, %c40] : memref<16x192xbf16, #tpu.memory_space<vmem>>, vector<16x8xbf16>
    %c0_53 = arith.constant 0 : index
    %c104 = arith.constant 104 : index
    %97 = vector.load %arg6[%c0_53, %c104] : memref<16x192xbf16, #tpu.memory_space<vmem>>, vector<16x8xbf16>
    %c0_54 = arith.constant 0 : index
    %c168 = arith.constant 168 : index
    %98 = vector.load %arg6[%c0_54, %c168] : memref<16x192xbf16, #tpu.memory_space<vmem>>, vector<16x8xbf16>
    %cst_55 = arith.constant dense<0.000000e+00> : vector<16x16xf32>
    %99 = tpu.matmul %96, %97, %cst_55 {dimension_numbers = #tpu.dot_dimension_numbers<[1], [1], [0], [0], [0, 0, 1, 0], [], []>} : vector<16x8xbf16>, vector<16x8xbf16>, vector<16x16xf32> -> vector<16x16xf32>
    %cst_56 = arith.constant dense<0xFF800000> : vector<16xf32>
    %100 = vector.multi_reduction <maximumf>, %99, %cst_56 [1] : vector<16x16xf32> to vector<16xf32>
    %101 = vector.shape_cast %100 : vector<16xf32> to vector<16x1xf32>
    %102 = vector.broadcast %101 : vector<16x1xf32> to vector<16x16xf32>
    %103 = arith.subf %99, %102 : vector<16x16xf32>
    %104 = math.exp %103 : vector<16x16xf32>
    %cst_57 = arith.constant dense<0.000000e+00> : vector<16xf32>
    %105 = vector.multi_reduction <add>, %104, %cst_57 [1] : vector<16x16xf32> to vector<16xf32>
    %106 = vector.shape_cast %105 : vector<16xf32> to vector<16x1xf32>
    %107 = tpu.reciprocal %106 {approx = true} : vector<16x1xf32> -> vector<16x1xf32>
    %108 = vector.broadcast %107 : vector<16x1xf32> to vector<16x16xf32>
    %109 = arith.mulf %104, %108 : vector<16x16xf32>
    %110 = arith.truncf %109 : vector<16x16xf32> to vector<16x16xbf16>
    %cst_58 = arith.constant dense<0.000000e+00> : vector<16x8xf32>
    %111 = tpu.matmul %110, %98, %cst_58 {dimension_numbers = #tpu.dot_dimension_numbers<[1], [0], [0], [1], [0, 0, 1, 1], [], []>} : vector<16x16xbf16>, vector<16x8xbf16>, vector<16x8xf32> -> vector<16x8xf32>
    %112 = arith.truncf %111 : vector<16x8xf32> to vector<16x8xbf16>
    %c0_59 = arith.constant 0 : index
    %c40_60 = arith.constant 40 : index
    %113 = vector.load %arg7[%c0_59, %c40_60] : memref<16x64xbf16, #tpu.memory_space<vmem>>, vector<16x8xbf16>
    tpu.vector_store %arg7[%c0_59, %c40_60], %112 {strides = array<i32>} : memref<16x64xbf16, #tpu.memory_space<vmem>>, vector<16x8xbf16>,
    %c0_61 = arith.constant 0 : index
    %c48 = arith.constant 48 : index
    %114 = vector.load %arg6[%c0_61, %c48] : memref<16x192xbf16, #tpu.memory_space<vmem>>, vector<16x8xbf16>
    %c0_62 = arith.constant 0 : index
    %c112 = arith.constant 112 : index
    %115 = vector.load %arg6[%c0_62, %c112] : memref<16x192xbf16, #tpu.memory_space<vmem>>, vector<16x8xbf16>
    %c0_63 = arith.constant 0 : index
    %c176 = arith.constant 176 : index
    %116 = vector.load %arg6[%c0_63, %c176] : memref<16x192xbf16, #tpu.memory_space<vmem>>, vector<16x8xbf16>
    %cst_64 = arith.constant dense<0.000000e+00> : vector<16x16xf32>
    %117 = tpu.matmul %114, %115, %cst_64 {dimension_numbers = #tpu.dot_dimension_numbers<[1], [1], [0], [0], [0, 0, 1, 0], [], []>} : vector<16x8xbf16>, vector<16x8xbf16>, vector<16x16xf32> -> vector<16x16xf32>
    %cst_65 = arith.constant dense<0xFF800000> : vector<16xf32>
    %118 = vector.multi_reduction <maximumf>, %117, %cst_65 [1] : vector<16x16xf32> to vector<16xf32>
    %119 = vector.shape_cast %118 : vector<16xf32> to vector<16x1xf32>
    %120 = vector.broadcast %119 : vector<16x1xf32> to vector<16x16xf32>
    %121 = arith.subf %117, %120 : vector<16x16xf32>
    %122 = math.exp %121 : vector<16x16xf32>
    %cst_66 = arith.constant dense<0.000000e+00> : vector<16xf32>
    %123 = vector.multi_reduction <add>, %122, %cst_66 [1] : vector<16x16xf32> to vector<16xf32>
    %124 = vector.shape_cast %123 : vector<16xf32> to vector<16x1xf32>
    %125 = tpu.reciprocal %124 {approx = true} : vector<16x1xf32> -> vector<16x1xf32>
    %126 = vector.broadcast %125 : vector<16x1xf32> to vector<16x16xf32>
    %127 = arith.mulf %122, %126 : vector<16x16xf32>
    %128 = arith.truncf %127 : vector<16x16xf32> to vector<16x16xbf16>
    %cst_67 = arith.constant dense<0.000000e+00> : vector<16x8xf32>
    %129 = tpu.matmul %128, %116, %cst_67 {dimension_numbers = #tpu.dot_dimension_numbers<[1], [0], [0], [1], [0, 0, 1, 1], [], []>} : vector<16x16xbf16>, vector<16x8xbf16>, vector<16x8xf32> -> vector<16x8xf32>
    %130 = arith.truncf %129 : vector<16x8xf32> to vector<16x8xbf16>
    %c0_68 = arith.constant 0 : index
    %c48_69 = arith.constant 48 : index
    %131 = vector.load %arg7[%c0_68, %c48_69] : memref<16x64xbf16, #tpu.memory_space<vmem>>, vector<16x8xbf16>
    tpu.vector_store %arg7[%c0_68, %c48_69], %130 {strides = array<i32>} : memref<16x64xbf16, #tpu.memory_space<vmem>>, vector<16x8xbf16>,
    %c0_70 = arith.constant 0 : index
    %c56 = arith.constant 56 : index
    %132 = vector.load %arg6[%c0_70, %c56] : memref<16x192xbf16, #tpu.memory_space<vmem>>, vector<16x8xbf16>
    %c0_71 = arith.constant 0 : index
    %c120 = arith.constant 120 : index
    %133 = vector.load %arg6[%c0_71, %c120] : memref<16x192xbf16, #tpu.memory_space<vmem>>, vector<16x8xbf16>
    %c0_72 = arith.constant 0 : index
    %c184 = arith.constant 184 : index
    %134 = vector.load %arg6[%c0_72, %c184] : memref<16x192xbf16, #tpu.memory_space<vmem>>, vector<16x8xbf16>
    %cst_73 = arith.constant dense<0.000000e+00> : vector<16x16xf32>
    %135 = tpu.matmul %132, %133, %cst_73 {dimension_numbers = #tpu.dot_dimension_numbers<[1], [1], [0], [0], [0, 0, 1, 0], [], []>} : vector<16x8xbf16>, vector<16x8xbf16>, vector<16x16xf32> -> vector<16x16xf32>
    %cst_74 = arith.constant dense<0xFF800000> : vector<16xf32>
    %136 = vector.multi_reduction <maximumf>, %135, %cst_74 [1] : vector<16x16xf32> to vector<16xf32>
    %137 = vector.shape_cast %136 : vector<16xf32> to vector<16x1xf32>
    %138 = vector.broadcast %137 : vector<16x1xf32> to vector<16x16xf32>
    %139 = arith.subf %135, %138 : vector<16x16xf32>
    %140 = math.exp %139 : vector<16x16xf32>
    %cst_75 = arith.constant dense<0.000000e+00> : vector<16xf32>
    %141 = vector.multi_reduction <add>, %140, %cst_75 [1] : vector<16x16xf32> to vector<16xf32>
    %142 = vector.shape_cast %141 : vector<16xf32> to vector<16x1xf32>
    %143 = tpu.reciprocal %142 {approx = true} : vector<16x1xf32> -> vector<16x1xf32>
    %144 = vector.broadcast %143 : vector<16x1xf32> to vector<16x16xf32>
    %145 = arith.mulf %140, %144 : vector<16x16xf32>
    %146 = arith.truncf %145 : vector<16x16xf32> to vector<16x16xbf16>
    %cst_76 = arith.constant dense<0.000000e+00> : vector<16x8xf32>
    %147 = tpu.matmul %146, %134, %cst_76 {dimension_numbers = #tpu.dot_dimension_numbers<[1], [0], [0], [1], [0, 0, 1, 1], [], []>} : vector<16x16xbf16>, vector<16x8xbf16>, vector<16x8xf32> -> vector<16x8xf32>
    %148 = arith.truncf %147 : vector<16x8xf32> to vector<16x8xbf16>
    %c0_77 = arith.constant 0 : index
    %c56_78 = arith.constant 56 : index
    %149 = vector.load %arg7[%c0_77, %c56_78] : memref<16x64xbf16, #tpu.memory_space<vmem>>, vector<16x8xbf16>
    tpu.vector_store %arg7[%c0_77, %c56_78], %148 {strides = array<i32>} : memref<16x64xbf16, #tpu.memory_space<vmem>>, vector<16x8xbf16>,
    %c0_79 = arith.constant 0 : index
    %c0_80 = arith.constant 0 : index
    %150 = vector.load %arg7[%c0_79, %c0_80] : memref<16x64xbf16, #tpu.memory_space<vmem>>, vector<16x64xbf16>
    %c0_81 = arith.constant 0 : index
    %c0_82 = arith.constant 0 : index
    %151 = vector.load %arg3[%c0_81, %c0_82] : memref<64x64xbf16, #tpu.memory_space<vmem>>, vector<64x64xbf16>
    %cst_83 = arith.constant dense<0.000000e+00> : vector<16x64xf32>
    %152 = tpu.matmul %150, %151, %cst_83 {dimension_numbers = #tpu.dot_dimension_numbers<[1], [0], [0], [1], [0, 0, 1, 1], [], []>} : vector<16x64xbf16>, vector<64x64xbf16>, vector<16x64xf32> -> vector<16x64xf32>
    %c0_84 = arith.constant 0 : index
    %c0_85 = arith.constant 0 : index
    %153 = vector.load %arg4[%c0_84, %c0_85] : memref<1x64xf32, #tpu.memory_space<vmem>>, vector<1x64xf32>
    %154 = vector.broadcast %153 : vector<1x64xf32> to vector<16x64xf32>
    %155 = arith.addf %152, %154 : vector<16x64xf32>
    %c0_86 = arith.constant 0 : index
    %c0_87 = arith.constant 0 : index
    %c0_88 = arith.constant 0 : index
    %156 = vector.load %arg5[%c0_86, %c0_87, %c0_88] : memref<1x16x64xf32, #tpu.memory_space<vmem>>, vector<1x16x64xf32>
    %157 = vector.shape_cast %156 : vector<1x16x64xf32> to vector<16x64xf32>
    %158 = vector.shape_cast %155 : vector<16x64xf32> to vector<1x16x64xf32>
    tpu.vector_store %arg5[%c0_86, %c0_87, %c0_88], %158 {strides = array<i32>} : memref<1x16x64xf32, #tpu.memory_space<vmem>>, vector<1x16x64xf32>,
    return
  }
  func.func @transform_0(%arg0: i32) -> (i32, i32, i32) {
    %c0_i32 = arith.constant 0 : i32
    %c0_i32_0 = arith.constant 0 : i32
    %c0_i32_1 = arith.constant 0 : i32
    return %arg0, %c0_i32, %c0_i32_0 : i32, i32, i32
  }
  func.func @transform_1(%arg0: i32) -> (i32, i32) {
    %c0_i32 = arith.constant 0 : i32
    %c0_i32_0 = arith.constant 0 : i32
    %c0_i32_1 = arith.constant 0 : i32
    return %c0_i32, %c0_i32_0 : i32, i32
  }
  func.func @transform_2(%arg0: i32) -> (i32, i32) {
    %c0_i32 = arith.constant 0 : i32
    %c0_i32_0 = arith.constant 0 : i32
    %c0_i32_1 = arith.constant 0 : i32
    return %c0_i32, %c0_i32_0 : i32, i32
  }
  func.func @transform_3(%arg0: i32) -> (i32, i32) {
    %c0_i32 = arith.constant 0 : i32
    %c0_i32_0 = arith.constant 0 : i32
    %c0_i32_1 = arith.constant 0 : i32
    return %c0_i32, %c0_i32_0 : i32, i32
  }
  func.func @transform_4(%arg0: i32) -> (i32, i32, i32) {
    %c0_i32 = arith.constant 0 : i32
    %c0_i32_0 = arith.constant 0 : i32
    %c0_i32_1 = arith.constant 0 : i32
    return %arg0, %c0_i32, %c0_i32_0 : i32, i32, i32
  }
}

</mosaic_0001>

<llo_original>
// kernel: tpu_custom_call.1
$region0: #{tpu_custom_call.1}
  #allocation0 [shape = 'u32[]', space=smem, size = 0x4, offset = 0x4, fixed_abs, tag = 'smem constant byte address 0x4 - core index']
  #allocation1 [shape = 'u32[72,128]{1,0:T(1,128)}', space=vmem, size = 0x9000, scoped, tag = 'internal scratch']
  #allocation2 [shape = 'bf16[16,192]{1,0:T(8,128)(2,1)}', space=vmem, size = 0x2000, scoped, tag = 'scratch operand']
  #allocation3 [shape = 'bf16[16,64]{1,0:T(8,128)(2,1)}', space=vmem, size = 0x1000, scoped, tag = 'scratch operand']
  %s0 = inlined_call_operand.hbm [shape: bf16[2,16,64], index: 0, kind: input, shape index: {}]
  %s1 = inlined_call_operand.hbm [shape: bf16[64,192], index: 1, kind: input, shape index: {}]
  %s2 = inlined_call_operand.hbm [shape: bf16[64,64], index: 2, kind: input, shape index: {}]
  %s3 = inlined_call_operand.vmem [shape: f32[1,64], index: 3, kind: input, shape index: {}]
  %s4 = inlined_call_operand.hbm [shape: f32[2,16,64], index: 4, kind: output, shape index: {}]
  %s5 = sld [smem:[#allocation0]]
  $region61: #{tpu_custom_call.1} parent=0
    _
  %s7 = ssub.s32 1, %s5
  %s8 = scalar_select 0, %s7, %s5
  $region1: #{tpu_custom_call.1} parent=0
    #allocation4 [shape = 'u8[8192]{0}', space=vmem, size = 0x2000, scoped, tag = 'input window, operand 0']
    #allocation5 [shape = 's32[2]{0}', space=sflag, size = 0x8, scoped, tag = 'scoped memory for tpu_custom_call.1']
    #allocation6 [shape = 's32[2]{0}', space=sflag, size = 0x8, scoped, tag = 'scoped memory for tpu_custom_call.1']
    #allocation7 [shape = 'u8[32768]{0}', space=vmem, size = 0x8000, scoped, tag = 'input window, operand 1, single buffered']
    #allocation8 [shape = 's32[1]{0}', space=sflag, size = 0x4, scoped, tag = 'scoped memory for tpu_custom_call.1']
    #allocation9 [shape = 'u8[16384]{0}', space=vmem, size = 0x4000, scoped, tag = 'input window, operand 2, single buffered']
    #allocation10 [shape = 'u8[16384]{0}', space=vmem, size = 0x4000, scoped, tag = 'output window, operand 0']
    %9 = vsyncpa [#allocation5], 0
    %s10 = scalar_lea.sflag [#allocation5], 1
    %11 = vsyncpa %s10, 0
    %12 = vsyncpa [#allocation8], 0
    %13 = vsyncpa [#allocation6], 0
    %s14 = scalar_lea.sflag [#allocation6], 1
    %15 = vsyncpa %s14, 0
    loop: start=0, step=1, limit=4
    $region2: #{tpu_custom_call.1} parent=1 // loop_pre_header
      _
    $region3: #{tpu_custom_call.1} parent=1 // loop_header
      %s17 = sphi 0, %s21
      %p18 = scmp.ge.s32.totalorder %s17, 4
      %s27 = sphi 0, %s29
      %s30 = sphi 0, %s27
      %s31 = sphi 0, %s30
      %s47 = sphi 0, %s31
      %s51 = sphi 0, %s51
      %s53 = sphi 0, %s51
      %s54 = sphi 0, %s53
      %s68 = sphi 0, %s54
      %s72 = sphi 0, %s72
      %s74 = sphi 0, %s72
      %s75 = sphi 0, %s74
      %s89 = sphi 0, %s75
      %s93 = sphi 0, %s93
      %s95 = sphi 0, %s93
      %s96 = sphi 0, %s95
      %s110 = sphi 0, %s96
      %s116 = sphi 0, %s118
      %s119 = sphi 0, %s116
      %s120 = sphi 0, %s119
      %s136 = sphi 0, %s120
    $region4: #{tpu_custom_call.1} parent=1 // loop_header_branch
      %20 = sbr.rel (%p18) target = $region8
    $region5: #{tpu_custom_call.1} parent=1 // loop_body
      %s22 = ssub.s32 %s17, 1
      %s23 = ssub.s32 %s17, 2
      %s24 = sadd.s32 %s17, 1
      %s25 = ssub.s32 %s17, %s24
      %p26 = scmp.eq.s32.totalorder %s25, 0
      %s28 = sadd.s32 %s27, 1
      %s29 = scalar_select %p26, %s27, %s28
      %p32 = pneg %p26
      %p33 = scmp.eq.s32.totalorder %s17, 1
      %p34 = por %p32, %p33
      %p35 = scmp.ne.s32.totalorder %s27, %s30
      %p36 = scmp.eq.s32.totalorder %s17, 0
      %p37 = por %p35, %p36
      %p38 = scmp.ne.s32.totalorder %s27, %s30
      %p39 = scmp.eq.s32.totalorder %s22, 1
      %p40 = por %p38, %p39
      %p41 = scmp.ne.s32.totalorder %s30, %s31
      %p42 = scmp.eq.s32.totalorder %s22, 0
      %p43 = por %p41, %p42
      %p44 = scmp.ne.s32.totalorder %s30, %s31
      %p45 = scmp.eq.s32.totalorder %s23, 1
      %p46 = por %p44, %p45
      %p48 = scmp.ne.s32.totalorder %s31, %s47
      %p49 = scmp.eq.s32.totalorder %s23, 0
      %p50 = por %p48, %p49
      %s52 = sadd.s32 %s51, 1
      %p55 = scmp.eq.s32.totalorder %s17, 1
      %p56 = scmp.ne.s32.totalorder %s51, %s53
      %p57 = scmp.eq.s32.totalorder %s17, 0
      %p58 = por %p56, %p57
      %p59 = scmp.ne.s32.totalorder %s51, %s53
      %p60 = scmp.eq.s32.totalorder %s22, 1
      %p61 = por %p59, %p60
      %p62 = scmp.ne.s32.totalorder %s53, %s54
      %p63 = scmp.eq.s32.totalorder %s22, 0
      %p64 = por %p62, %p63
      %p65 = scmp.ne.s32.totalorder %s53, %s54
      %p66 = scmp.eq.s32.totalorder %s23, 1
      %p67 = por %p65, %p66
      %p69 = scmp.ne.s32.totalorder %s54, %s68
      %p70 = scmp.eq.s32.totalorder %s23, 0
      %p71 = por %p69, %p70
      %s73 = sadd.s32 %s72, 1
      %p76 = scmp.eq.s32.totalorder %s17, 1
      %p77 = scmp.ne.s32.totalorder %s72, %s74
      %p78 = scmp.eq.s32.totalorder %s17, 0
      %p79 = por %p77, %p78
      %p80 = scmp.ne.s32.totalorder %s72, %s74
      %p81 = scmp.eq.s32.totalorder %s22, 1
      %p82 = por %p80, %p81
      %p83 = scmp.ne.s32.totalorder %s74, %s75
      %p84 = scmp.eq.s32.totalorder %s22, 0
      %p85 = por %p83, %p84
      %p86 = scmp.ne.s32.totalorder %s74, %s75
      %p87 = scmp.eq.s32.totalorder %s23, 1
      %p88 = por %p86, %p87
      %p90 = scmp.ne.s32.totalorder %s75, %s89
      %p91 = scmp.eq.s32.totalorder %s23, 0
      %p92 = por %p90, %p91
      %s94 = sadd.s32 %s93, 1
      %p97 = scmp.eq.s32.totalorder %s17, 1
      %p98 = scmp.ne.s32.totalorder %s93, %s95
      %p99 = scmp.eq.s32.totalorder %s17, 0
      %p100 = por %p98, %p99
      %p101 = scmp.ne.s32.totalorder %s93, %s95
      %p102 = scmp.eq.s32.totalorder %s22, 1
      %p103 = por %p101, %p102
      %p104 = scmp.ne.s32.totalorder %s95, %s96
      %p105 = scmp.eq.s32.totalorder %s22, 0
      %p106 = por %p104, %p105
      %p107 = scmp.ne.s32.totalorder %s95, %s96
      %p108 = scmp.eq.s32.totalorder %s23, 1
      %p109 = por %p107, %p108
      %p111 = scmp.ne.s32.totalorder %s96, %s110
      %p112 = scmp.eq.s32.totalorder %s23, 0
      %p113 = por %p111, %p112
      %s114 = ssub.s32 %s17, %s24
      %p115 = scmp.eq.s32.totalorder %s114, 0
      %s117 = sadd.s32 %s116, 1
      %s118 = scalar_select %p115, %s116, %s117
      %p121 = pneg %p115
      %p122 = scmp.eq.s32.totalorder %s17, 1
      %p123 = por %p121, %p122
      %p124 = scmp.ne.s32.totalorder %s116, %s119
      %p125 = scmp.eq.s32.totalorder %s17, 0
      %p126 = por %p124, %p125
      %p127 = scmp.ne.s32.totalorder %s116, %s119
      %p128 = scmp.eq.s32.totalorder %s22, 1
      %p129 = por %p127, %p128
      %p130 = scmp.ne.s32.totalorder %s119, %s120
      %p131 = scmp.eq.s32.totalorder %s22, 0
      %p132 = por %p130, %p131
      %p133 = scmp.ne.s32.totalorder %s119, %s120
      %p134 = scmp.eq.s32.totalorder %s23, 1
      %p135 = por %p133, %p134
      %p137 = scmp.ne.s32.totalorder %s120, %s136
      %p138 = scmp.eq.s32.totalorder %s23, 0
      %p139 = por %p137, %p138
      %p140 = scmp.le.s32.totalorder 1, %s17
      %p141 = scmp.lt.s32.totalorder %s17, 3
      %p142 = pnand %p140, %p141
      %p143 = pneg %p142
      // Predicated region
      $region9: #{tpu_custom_call.1} parent=5 // pred_check
        _
      $region10: #{tpu_custom_call.1} parent=5 // pred_check_branch
        %145 = sbr.rel (%p142) target = $region12
      $region11: #{tpu_custom_call.1} parent=5 // pred_region
        %s146 = ssub.s32 %s17, 1
        // Predicated region
        $region13: #{tpu_custom_call.1} parent=11 // pred_check
          %p147 = pneg %p64
        $region14: #{tpu_custom_call.1} parent=11 // pred_check_branch
          %149 = sbr.rel (%p147) target = $region16
        $region15: #{tpu_custom_call.1} parent=11 // pred_region
          %151 = vsyncadd [#allocation8], 0
          %s152 = sshll.u32 %s1, 4
          %s153 = int_to_ptr.hbm [resolvable:$true] %s152
          %s154 = sshll.u32 [#allocation7], 4
          %s155 = int_to_ptr.vmem [resolvable:$true] %s154
          %160 = dma.hbm_to_vmem [thread:$0]  %s153, 1024, %s155, [#allocation8], 128, 128, 8
        $region16: #{tpu_custom_call.1} parent=11 // pred_fallthru
          _
        // Predicated region
        $region17: #{tpu_custom_call.1} parent=11 // pred_check
          %p161 = pneg %p85
        $region18: #{tpu_custom_call.1} parent=11 // pred_check_branch
          %163 = sbr.rel (%p161) target = $region20
        $region19: #{tpu_custom_call.1} parent=11 // pred_region
          %165 = vsyncadd [#allocation8], 0
          %s166 = sshll.u32 %s2, 4
          %s167 = int_to_ptr.hbm [resolvable:$true] %s166
          %s168 = sshll.u32 [#allocation9], 4
          %s169 = int_to_ptr.vmem [resolvable:$true] %s168
          %174 = dma.hbm_to_vmem [thread:$0]  %s167, 512, %s169, [#allocation8], 64, 64, 4
        $region20: #{tpu_custom_call.1} parent=11 // pred_fallthru
          _
        // Predicated region
        $region21: #{tpu_custom_call.1} parent=11 // pred_check
          %p175 = pneg %p106
        $region22: #{tpu_custom_call.1} parent=11 // pred_check_branch
          %177 = sbr.rel (%p175) target = $region24
        $region23: #{tpu_custom_call.1} parent=11 // pred_region
          _
        $region24: #{tpu_custom_call.1} parent=11 // pred_fallthru
          _
      $region12: #{tpu_custom_call.1} parent=5 // pred_fallthru
        _
      %p178 = scmp.lt.s32.totalorder %s17, 2
      // Predicated region
      $region25: #{tpu_custom_call.1} parent=5 // pred_check
        %p179 = pneg %p178
      $region26: #{tpu_custom_call.1} parent=5 // pred_check_branch
        %181 = sbr.rel (%p179) target = $region28
      $region27: #{tpu_custom_call.1} parent=5 // pred_region
        // Predicated region
        $region29: #{tpu_custom_call.1} parent=27 // pred_check
          %p182 = pneg %p37
        $region30: #{tpu_custom_call.1} parent=27 // pred_check_branch
          %184 = sbr.rel (%p182) target = $region32
        $region31: #{tpu_custom_call.1} parent=27 // pred_region
          %s185 = sand.u32 %s27, 1
          %s186 = scalar_lea.sflag [#allocation5], %s185
          %s187 = sand.u32 %s27, 1
          %s188 = smul.addr %s187, 8
          %s189 = scalar_lea.vmem [#allocation4], %s188
          %191 = vsyncadd %s186, 0
          %s192 = smul.addr %s17, 2
          %s193 = smul.addr %s192, 4
          %s194 = scalar_lea.hbm %s0, %s193
          %s195 = sshll.u32 %s194, 4
          %s196 = int_to_ptr.hbm [resolvable:$true] %s195
          %s197 = sshll.u32 %s189, 4
          %s198 = int_to_ptr.vmem [resolvable:$true] %s197
          %203 = dma.hbm_to_vmem [thread:$0]  %s196, 128, %s198, %s186, 64, 64, 4
        $region32: #{tpu_custom_call.1} parent=27 // pred_fallthru
          _
      $region28: #{tpu_custom_call.1} parent=5 // pred_fallthru
        _
      %p204 = scmp.le.s32.totalorder 1, %s17
      %p205 = scmp.lt.s32.totalorder %s17, 3
      %p206 = pnand %p204, %p205
      %p207 = pneg %p206
      // Predicated region
      $region33: #{tpu_custom_call.1} parent=5 // pred_check
        _
      $region34: #{tpu_custom_call.1} parent=5 // pred_check_branch
        %209 = sbr.rel (%p206) target = $region36
      $region35: #{tpu_custom_call.1} parent=5 // pred_region
        %s210 = ssub.s32 %s17, 1
        %s211 = sand.u32 %s30, 1
        %s212 = scalar_lea.sflag [#allocation5], %s211
        %s213 = sand.u32 %s30, 1
        %s214 = smul.addr %s213, 8
        %s215 = scalar_lea.vmem [#allocation4], %s214
        // Predicated region
        $region37: #{tpu_custom_call.1} parent=35 // pred_check
          %p216 = pneg %p43
        $region38: #{tpu_custom_call.1} parent=35 // pred_check_branch
          %218 = sbr.rel (%p216) target = $region40
        $region39: #{tpu_custom_call.1} parent=35 // pred_region
          %220 = dma.done %s212, 128
        $region40: #{tpu_custom_call.1} parent=35 // pred_fallthru
          _
        // Predicated region
        $region41: #{tpu_custom_call.1} parent=35 // pred_check
          %p221 = pneg %p64
        $region42: #{tpu_custom_call.1} parent=35 // pred_check_branch
          %223 = sbr.rel (%p221) target = $region44
        $region43: #{tpu_custom_call.1} parent=35 // pred_region
          %225 = dma.done [#allocation8], 1024
        $region44: #{tpu_custom_call.1} parent=35 // pred_fallthru
          _
        // Predicated region
        $region45: #{tpu_custom_call.1} parent=35 // pred_check
          %p226 = pneg %p85
        $region46: #{tpu_custom_call.1} parent=35 // pred_check_branch
          %228 = sbr.rel (%p226) target = $region48
        $region47: #{tpu_custom_call.1} parent=35 // pred_region
          %230 = dma.done [#allocation8], 512
        $region48: #{tpu_custom_call.1} parent=35 // pred_fallthru
          _
        %s231 = sand.u32 %s30, 1
        %s232 = scalar_lea.sflag [#allocation5], %s231
        %s233 = sand.u32 %s30, 1
        %s234 = smul.addr %s233, 8
        %s235 = scalar_lea.vmem [#allocation4], %s234
        %p236 = pneg %p43
        %p237 = pneg %p40
        %p238 = pneg %p64
        %p239 = pneg %p61
        %p240 = pneg %p85
        %p241 = pneg %p82
        %p242 = pneg %p106
        %p243 = pneg %p103
        %p244 = pneg %p132
        %p245 = pneg %p129
        %s246 = sand.u32 %s119, 1
        %s247 = scalar_lea.sflag [#allocation6], %s246
        %s248 = sand.u32 %s119, 1
        %s249 = smul.addr %s248, 16
        %s250 = scalar_lea.vmem [#allocation10], %s249
        %v252 = vld [vmem:[%s215] sm:$0xf]
        %v253 = vld [vmem:[%s215 + $0x4] sm:$0xf]
        %v254 = vld [vmem:[#allocation7] sm:$0xff]
        %v255 = vld [vmem:[#allocation7 + $0x8] sm:$0xff]
        %v256 = vld [vmem:[#allocation7 + $0x10] sm:$0xff]
        %v257 = vld [vmem:[#allocation7 + $0x18] sm:$0xff]
        %v258 = vld [vmem:[#allocation7 + $0x20] sm:$0xff]
        %v259 = vld [vmem:[#allocation7 + $0x28] sm:$0xff]
        %v260 = vld [vmem:[#allocation7 + $0x30] sm:$0xff]
        %v261 = vld [vmem:[#allocation7 + $0x38] sm:$0xff]
        %v264 = vunpack.c.l.b16 %v252
        %v265 = vunpack.c.l.b16 %v253
        %v266 = vpack.c.b16 %v265, %v264
        %v275 = vunpack.c.l.b16 %v254
        %v276 = vunpack.c.h.b16 %v254
        %v277 = vunpack.c.l.b16 %v255
        %v278 = vunpack.c.h.b16 %v255
        %v279 = vunpack.c.l.b16 %v256
        %v280 = vunpack.c.h.b16 %v256
        %v281 = vunpack.c.l.b16 %v257
        %v282 = vunpack.c.h.b16 %v257
        %v283 = vunpack.c.l.b16 %v258
        %v284 = vunpack.c.h.b16 %v258
        %v285 = vunpack.c.l.b16 %v259
        %v286 = vunpack.c.h.b16 %v259
        %v287 = vunpack.c.l.b16 %v260
        %v288 = vunpack.c.h.b16 %v260
        %v289 = vunpack.c.l.b16 %v261
        %v290 = vunpack.c.h.b16 %v261
        %v291 = vpack.c.b16 %v277, %v275
        %v292 = vpack.c.b16 %v278, %v276
        %v293 = vpack.c.b16 %v281, %v279
        %v294 = vpack.c.b16 %v282, %v280
        %v295 = vpack.c.b16 %v285, %v283
        %v296 = vpack.c.b16 %v286, %v284
        %v297 = vpack.c.b16 %v289, %v287
        %v298 = vpack.c.b16 %v290, %v288
        %vm307 = vcmask 523264
        %v309 = vsel %vm307, %v266, 0
        %311 = vmatpush.bf16.msra.mxu0 0
        %312 = vmatpush.bf16.msra.mxu0 0
        %313 = vmatpush.bf16.msra.mxu0 0
        %314 = vmatpush.bf16.msra.mxu0 0
        %315 = vmatpush.bf16.msra.mxu0 %v297
        %316 = vmatpush.bf16.msra.mxu0 %v295
        %317 = vmatpush.bf16.msra.mxu0 %v293
        %318 = vmatpush.bf16.msra.mxu0 %v291
        %319 = vmatmul.bf16.gmra.mxu0 %v309
        %v320 = vpop.f32.mrf.mxu0
        %v321 = vadd.f32 0.0, %v320
        %v322 = vpop.f32.mrf.mxu0
        %v323 = vadd.f32 0.0, %v322
        %324 = vdwg.mxu0
        %325 = vmatpush.bf16.msra.mxu0 0
        %326 = vmatpush.bf16.msra.mxu0 0
        %327 = vmatpush.bf16.msra.mxu0 0
        %328 = vmatpush.bf16.msra.mxu0 0
        %329 = vmatpush.bf16.msra.mxu0 %v298
        %330 = vmatpush.bf16.msra.mxu0 %v296
        %331 = vmatpush.bf16.msra.mxu0 %v294
        %332 = vmatpush.bf16.msra.mxu0 %v292
        %333 = vmatmul.bf16.gmra.mxu0 %v309
        %v334 = vpop.f32.mrf.mxu0
        %v335 = vadd.f32 0.0, %v334
        %v336 = vpop.f32.mrf.mxu0
        %v337 = vadd.f32 0.0, %v336
        %338 = vdwg.mxu0
        %v339 = vpack.c.bf16 %v335, %v321
        %v340 = vpack.c.bf16 %v337, %v323
        %vm341 = vcmask 1043456
        %vm342 = vcmask 523268
        %vm343 = vmor %vm342, %vm341
        %344 = vst.msk [vmem:[#allocation2] sm:$0xff] %vm343, %v339
        %345 = vst.msk [vmem:[#allocation2 + $0x8] sm:$0xff] %vm343, %v340
        %v346 = vld [vmem:[#allocation2] sm:$0xf]
        %v347 = vld [vmem:[#allocation2 + $0x8] sm:$0xf]
        %v348 = vld [vmem:[#allocation2 + $0x4] sm:$0xf]
        %v349 = vld [vmem:[#allocation2 + $0xc] sm:$0xf]
        %v352 = vunpack.c.l.b16 %v346
        %v353 = vunpack.c.l.b16 %v347
        %v354 = vpack.c.b16 %v353, %v352
        %355 = vrot.lane.b32.xlu0 %v354, 64
        %v356 = vpop.permute.xlu0 %355
        %vm357 = vcmask 64512
        %v359 = vsel %vm357, %v354, 0
        %v362 = vsel %vm357, %v356, 0
        %364 = vmatpush.bf16.xpose.msra.mxu0 0
        %365 = vmatpush.bf16.xpose.msra.mxu0 0
        %366 = vmatpush.bf16.xpose.msra.mxu0 0
        %367 = vmatpush.bf16.xpose.msra.mxu0 0
        %368 = vmatpush.bf16.xpose.msra.mxu0 0
        %369 = vmatpush.bf16.xpose.msra.mxu0 0
        %370 = vmatpush.bf16.xpose.msra.mxu0 0
        %371 = vmatpush.bf16.xpose.msra.mxu0 %v362
        %372 = vmatmul.bf16.gmra.mxu0 %v359
        %v373 = vpop.f32.mrf.mxu0
        %v374 = vadd.f32 0.0, %v373
        %v375 = vpop.f32.mrf.mxu0
        %v376 = vadd.f32 0.0, %v375
        %377 = vdwg.mxu0
        %vm378 = vcmask 130048
        %v379 = vsel %vm378, %v374, -inf
        %380 = vmax.xlane.f32.xlu0 %v379
        %v381 = vpop.xlane.xlu0 %380
        %v382 = vsel %vm378, %v376, -inf
        %383 = vmax.xlane.f32.xlu0 %v382
        %v384 = vpop.xlane.xlu0 %383
        %v385 = vsub.f32 %v374, %v381
        %v386 = vsub.f32 %v376, %v384
        %v387 = vmul.f32 %v385, 1.442695
        %v388 = vpow.pop %v387
        %v389 = vmul.f32 %v386, 1.442695
        %v390 = vpow.pop %v389
        %v391 = vsel %vm378, %v388, 0.0
        %392 = vadd.xlane.f32.xlu0 %v391
        %v393 = vpop.xlane.xlu0 %392
        %v394 = vsel %vm378, %v390, 0.0
        %395 = vadd.xlane.f32.xlu0 %v394
        %v396 = vpop.xlane.xlu0 %395
        %v397 = vrcp.pop %v393
        %v398 = vrcp.pop %v396
        %v399 = vmul.f32 %v388, %v397
        %v400 = vmul.f32 %v390, %v398
        %v401 = vpack.c.bf16 %v400, %v399
        %v404 = vunpack.c.l.b16 %v348
        %v405 = vunpack.c.l.b16 %v349
        %v406 = vpack.c.b16 %v405, %v404
        %v409 = vsel %vm378, %v401, 0
        %411 = vmatpush.bf16.msra.mxu0 0
        %412 = vmatpush.bf16.msra.mxu0 0
        %413 = vmatpush.bf16.msra.mxu0 0
        %414 = vmatpush.bf16.msra.mxu0 0
        %415 = vmatpush.bf16.msra.mxu0 0
        %416 = vmatpush.bf16.msra.mxu0 0
        %417 = vmatpush.bf16.msra.mxu0 0
        %418 = vmatpush.bf16.msra.mxu0 %v406
        %419 = vmatmul.bf16.gmra.mxu0 %v409
        %v420 = vpop.f32.mrf.mxu0
        %v421 = vadd.f32 0.0, %v420
        %v422 = vpop.f32.mrf.mxu0
        %v423 = vadd.f32 0.0, %v422
        %424 = vdwg.mxu0
        %v425 = vpack.c.bf16 %v421, %v421
        %v426 = vpack.c.bf16 %v423, %v423
        %vm427 = vcmask 60416
        %428 = vst.msk [vmem:[#allocation3] sm:$0xf] %vm427, %v425
        %429 = vst.msk [vmem:[#allocation3 + $0x4] sm:$0xf] %vm427, %v426
        %v430 = vld [vmem:[#allocation2] sm:$0xf]
        %v431 = vld [vmem:[#allocation2 + $0x8] sm:$0xf]
        %v432 = vld [vmem:[#allocation2 + $0x4] sm:$0xf]
        %v433 = vld [vmem:[#allocation2 + $0xc] sm:$0xf]
        %v436 = vunpack.c.l.b16 %v430
        %v437 = vunpack.c.l.b16 %v431
        %v438 = vpack.c.b16 %v437, %v436
        %439 = vrot.lane.b32.xlu0 %v438, 120
        %v440 = vpop.permute.xlu0 %439
        %441 = vrot.lane.b32.xlu0 %v438, 56
        %v442 = vpop.permute.xlu0 %441
        %v444 = vsel %vm357, %v440, 0
        %v447 = vsel %vm357, %v442, 0
        %449 = vmatpush.bf16.xpose.msra.mxu0 0
        %450 = vmatpush.bf16.xpose.msra.mxu0 0
        %451 = vmatpush.bf16.xpose.msra.mxu0 0
        %452 = vmatpush.bf16.xpose.msra.mxu0 0
        %453 = vmatpush.bf16.xpose.msra.mxu0 0
        %454 = vmatpush.bf16.xpose.msra.mxu0 0
        %455 = vmatpush.bf16.xpose.msra.mxu0 0
        %456 = vmatpush.bf16.xpose.msra.mxu0 %v447
        %457 = vmatmul.bf16.gmra.mxu0 %v444
        %v458 = vpop.f32.mrf.mxu0
        %v459 = vadd.f32 0.0, %v458
        %v460 = vpop.f32.mrf.mxu0
        %v461 = vadd.f32 0.0, %v460
        %462 = vdwg.mxu0
        %v463 = vsel %vm378, %v459, -inf
        %464 = vmax.xlane.f32.xlu0 %v463
        %v465 = vpop.xlane.xlu0 %464
        %v466 = vsel %vm378, %v461, -inf
        %467 = vmax.xlane.f32.xlu0 %v466
        %v468 = vpop.xlane.xlu0 %467
        %v469 = vsub.f32 %v459, %v465
        %v470 = vsub.f32 %v461, %v468
        %v471 = vmul.f32 %v469, 1.442695
        %v472 = vpow.pop %v471
        %v473 = vmul.f32 %v470, 1.442695
        %v474 = vpow.pop %v473
        %v475 = vsel %vm378, %v472, 0.0
        %476 = vadd.xlane.f32.xlu0 %v475
        %v477 = vpop.xlane.xlu0 %476
        %v478 = vsel %vm378, %v474, 0.0
        %479 = vadd.xlane.f32.xlu0 %v478
        %v480 = vpop.xlane.xlu0 %479
        %v481 = vrcp.pop %v477
        %v482 = vrcp.pop %v480
        %v483 = vmul.f32 %v472, %v481
        %v484 = vmul.f32 %v474, %v482
        %v485 = vpack.c.bf16 %v484, %v483
        %v488 = vunpack.c.l.b16 %v432
        %v489 = vunpack.c.l.b16 %v433
        %v490 = vpack.c.b16 %v489, %v488
        %491 = vrot.lane.b32.xlu0 %v490, 120
        %v492 = vpop.permute.xlu0 %491
        %v495 = vsel %vm378, %v485, 0
        %497 = vmatpush.bf16.msra.mxu0 0
        %498 = vmatpush.bf16.msra.mxu0 0
        %499 = vmatpush.bf16.msra.mxu0 0
        %500 = vmatpush.bf16.msra.mxu0 0
        %501 = vmatpush.bf16.msra.mxu0 0
        %502 = vmatpush.bf16.msra.mxu0 0
        %503 = vmatpush.bf16.msra.mxu0 0
        %504 = vmatpush.bf16.msra.mxu0 %v492
        %505 = vmatmul.bf16.gmra.mxu0 %v495
        %v506 = vpop.f32.mrf.mxu0
        %v507 = vadd.f32 0.0, %v506
        %v508 = vpop.f32.mrf.mxu0
        %v509 = vadd.f32 0.0, %v508
        %510 = vdwg.mxu0
        %v511 = vpack.c.bf16 %v507, %v507
        %v512 = vpack.c.bf16 %v509, %v509
        %515 = vrot.lane.b32.xlu0 %v511, 8
        %v516 = vpop.permute.xlu0 %515
        %517 = vrot.lane.b32.xlu0 %v512, 8
        %v518 = vpop.permute.xlu0 %517
        %vm521 = vcmask 126016
        %522 = vst.msk [vmem:[#allocation3] sm:$0xf] %vm521, %v516
        %523 = vst.msk [vmem:[#allocation3 + $0x4] sm:$0xf] %vm521, %v518
        %v524 = vld [vmem:[#allocation2] sm:$0xf]
        %v525 = vld [vmem:[#allocation2 + $0x8] sm:$0xf]
        %v526 = vld [vmem:[#allocation2 + $0x4] sm:$0xf]
        %v527 = vld [vmem:[#allocation2 + $0xc] sm:$0xf]
        %v530 = vunpack.c.l.b16 %v524
        %v531 = vunpack.c.l.b16 %v525
        %v532 = vpack.c.b16 %v531, %v530
        %533 = vrot.lane.b32.xlu0 %v532, 112
        %v534 = vpop.permute.xlu0 %533
        %535 = vrot.lane.b32.xlu0 %v532, 48
        %v536 = vpop.permute.xlu0 %535
        %v538 = vsel %vm357, %v534, 0
        %v541 = vsel %vm357, %v536, 0
        %543 = vmatpush.bf16.xpose.msra.mxu0 0
        %544 = vmatpush.bf16.xpose.msra.mxu0 0
        %545 = vmatpush.bf16.xpose.msra.mxu0 0
        %546 = vmatpush.bf16.xpose.msra.mxu0 0
        %547 = vmatpush.bf16.xpose.msra.mxu0 0
        %548 = vmatpush.bf16.xpose.msra.mxu0 0
        %549 = vmatpush.bf16.xpose.msra.mxu0 0
        %550 = vmatpush.bf16.xpose.msra.mxu0 %v541
        %551 = vmatmul.bf16.gmra.mxu0 %v538
        %v552 = vpop.f32.mrf.mxu0
        %v553 = vadd.f32 0.0, %v552
        %v554 = vpop.f32.mrf.mxu0
        %v555 = vadd.f32 0.0, %v554
        %556 = vdwg.mxu0
        %v557 = vsel %vm378, %v553, -inf
        %558 = vmax.xlane.f32.xlu0 %v557
        %v559 = vpop.xlane.xlu0 %558
        %v560 = vsel %vm378, %v555, -inf
        %561 = vmax.xlane.f32.xlu0 %v560
        %v562 = vpop.xlane.xlu0 %561
        %v563 = vsub.f32 %v553, %v559
        %v564 = vsub.f32 %v555, %v562
        %v565 = vmul.f32 %v563, 1.442695
        %v566 = vpow.pop %v565
        %v567 = vmul.f32 %v564, 1.442695
        %v568 = vpow.pop %v567
        %v569 = vsel %vm378, %v566, 0.0
        %570 = vadd.xlane.f32.xlu0 %v569
        %v571 = vpop.xlane.xlu0 %570
        %v572 = vsel %vm378, %v568, 0.0
        %573 = vadd.xlane.f32.xlu0 %v572
        %v574 = vpop.xlane.xlu0 %573
        %v575 = vrcp.pop %v571
        %v576 = vrcp.pop %v574
        %v577 = vmul.f32 %v566, %v575
        %v578 = vmul.f32 %v568, %v576
        %v579 = vpack.c.bf16 %v578, %v577
        %v582 = vunpack.c.l.b16 %v526
        %v583 = vunpack.c.l.b16 %v527
        %v584 = vpack.c.b16 %v583, %v582
        %585 = vrot.lane.b32.xlu0 %v584, 112
        %v586 = vpop.permute.xlu0 %585
        %v589 = vsel %vm378, %v579, 0
        %591 = vmatpush.bf16.msra.mxu0 0
        %592 = vmatpush.bf16.msra.mxu0 0
        %593 = vmatpush.bf16.msra.mxu0 0
        %594 = vmatpush.bf16.msra.mxu0 0
        %595 = vmatpush.bf16.msra.mxu0 0
        %596 = vmatpush.bf16.msra.mxu0 0
        %597 = vmatpush.bf16.msra.mxu0 0
        %598 = vmatpush.bf16.msra.mxu0 %v586
        %599 = vmatmul.bf16.gmra.mxu0 %v589
        %v600 = vpop.f32.mrf.mxu0
        %v601 = vadd.f32 0.0, %v600
        %v602 = vpop.f32.mrf.mxu0
        %v603 = vadd.f32 0.0, %v602
        %604 = vdwg.mxu0
        %v605 = vpack.c.bf16 %v601, %v601
        %v606 = vpack.c.bf16 %v603, %v603
        %609 = vrot.lane.b32.xlu0 %v605, 16
        %v610 = vpop.permute.xlu0 %609
        %611 = vrot.lane.b32.xlu0 %v606, 16
        %v612 = vpop.permute.xlu0 %611
        %vm615 = vcmask 191616
        %616 = vst.msk [vmem:[#allocation3] sm:$0xf] %vm615, %v610
        %617 = vst.msk [vmem:[#allocation3 + $0x4] sm:$0xf] %vm615, %v612
        %v618 = vld [vmem:[#allocation2] sm:$0xf]
        %v619 = vld [vmem:[#allocation2 + $0x8] sm:$0xf]
        %v620 = vld [vmem:[#allocation2 + $0x4] sm:$0xf]
        %v621 = vld [vmem:[#allocation2 + $0xc] sm:$0xf]
        %v624 = vunpack.c.l.b16 %v618
        %v625 = vunpack.c.l.b16 %v619
        %v626 = vpack.c.b16 %v625, %v624
        %627 = vrot.lane.b32.xlu0 %v626, 104
        %v628 = vpop.permute.xlu0 %627
        %629 = vrot.lane.b32.xlu0 %v626, 40
        %v630 = vpop.permute.xlu0 %629
        %v632 = vsel %vm357, %v628, 0
        %v635 = vsel %vm357, %v630, 0
        %637 = vmatpush.bf16.xpose.msra.mxu0 0
        %638 = vmatpush.bf16.xpose.msra.mxu0 0
        %639 = vmatpush.bf16.xpose.msra.mxu0 0
        %640 = vmatpush.bf16.xpose.msra.mxu0 0
        %641 = vmatpush.bf16.xpose.msra.mxu0 0
        %642 = vmatpush.bf16.xpose.msra.mxu0 0
        %643 = vmatpush.bf16.xpose.msra.mxu0 0
        %644 = vmatpush.bf16.xpose.msra.mxu0 %v635
        %645 = vmatmul.bf16.gmra.mxu0 %v632
        %v646 = vpop.f32.mrf.mxu0
        %v647 = vadd.f32 0.0, %v646
        %v648 = vpop.f32.mrf.mxu0
        %v649 = vadd.f32 0.0, %v648
        %650 = vdwg.mxu0
        %v651 = vsel %vm378, %v647, -inf
        %652 = vmax.xlane.f32.xlu0 %v651
        %v653 = vpop.xlane.xlu0 %652
        %v654 = vsel %vm378, %v649, -inf
        %655 = vmax.xlane.f32.xlu0 %v654
        %v656 = vpop.xlane.xlu0 %655
        %v657 = vsub.f32 %v647, %v653
        %v658 = vsub.f32 %v649, %v656
        %v659 = vmul.f32 %v657, 1.442695
        %v660 = vpow.pop %v659
        %v661 = vmul.f32 %v658, 1.442695
        %v662 = vpow.pop %v661
        %v663 = vsel %vm378, %v660, 0.0
        %664 = vadd.xlane.f32.xlu0 %v663
        %v665 = vpop.xlane.xlu0 %664
        %v666 = vsel %vm378, %v662, 0.0
        %667 = vadd.xlane.f32.xlu0 %v666
        %v668 = vpop.xlane.xlu0 %667
        %v669 = vrcp.pop %v665
        %v670 = vrcp.pop %v668
        %v671 = vmul.f32 %v660, %v669
        %v672 = vmul.f32 %v662, %v670
        %v673 = vpack.c.bf16 %v672, %v671
        %v676 = vunpack.c.l.b16 %v620
        %v677 = vunpack.c.l.b16 %v621
        %v678 = vpack.c.b16 %v677, %v676
        %679 = vrot.lane.b32.xlu0 %v678, 104
        %v680 = vpop.permute.xlu0 %679
        %v683 = vsel %vm378, %v673, 0
        %685 = vmatpush.bf16.msra.mxu0 0
        %686 = vmatpush.bf16.msra.mxu0 0
        %687 = vmatpush.bf16.msra.mxu0 0
        %688 = vmatpush.bf16.msra.mxu0 0
        %689 = vmatpush.bf16.msra.mxu0 0
        %690 = vmatpush.bf16.msra.mxu0 0
        %691 = vmatpush.bf16.msra.mxu0 0
        %692 = vmatpush.bf16.msra.mxu0 %v680
        %693 = vmatmul.bf16.gmra.mxu0 %v683
        %v694 = vpop.f32.mrf.mxu0
        %v695 = vadd.f32 0.0, %v694
        %v696 = vpop.f32.mrf.mxu0
        %v697 = vadd.f32 0.0, %v696
        %698 = vdwg.mxu0
        %v699 = vpack.c.bf16 %v695, %v695
        %v700 = vpack.c.bf16 %v697, %v697
        %703 = vrot.lane.b32.xlu0 %v699, 24
        %v704 = vpop.permute.xlu0 %703
        %705 = vrot.lane.b32.xlu0 %v700, 24
        %v706 = vpop.permute.xlu0 %705
        %vm709 = vcmask 257216
        %710 = vst.msk [vmem:[#allocation3] sm:$0xf] %vm709, %v704
        %711 = vst.msk [vmem:[#allocation3 + $0x4] sm:$0xf] %vm709, %v706
        %v712 = vld [vmem:[#allocation2] sm:$0xf]
        %v713 = vld [vmem:[#allocation2 + $0x8] sm:$0xf]
        %v714 = vld [vmem:[#allocation2 + $0x4] sm:$0xf]
        %v715 = vld [vmem:[#allocation2 + $0xc] sm:$0xf]
        %v718 = vunpack.c.l.b16 %v712
        %v719 = vunpack.c.l.b16 %v713
        %v720 = vpack.c.b16 %v719, %v718
        %721 = vrot.lane.b32.xlu0 %v720, 96
        %v722 = vpop.permute.xlu0 %721
        %723 = vrot.lane.b32.xlu0 %v720, 32
        %v724 = vpop.permute.xlu0 %723
        %v726 = vsel %vm357, %v722, 0
        %v729 = vsel %vm357, %v724, 0
        %731 = vmatpush.bf16.xpose.msra.mxu0 0
        %732 = vmatpush.bf16.xpose.msra.mxu0 0
        %733 = vmatpush.bf16.xpose.msra.mxu0 0
        %734 = vmatpush.bf16.xpose.msra.mxu0 0
        %735 = vmatpush.bf16.xpose.msra.mxu0 0
        %736 = vmatpush.bf16.xpose.msra.mxu0 0
        %737 = vmatpush.bf16.xpose.msra.mxu0 0
        %738 = vmatpush.bf16.xpose.msra.mxu0 %v729
        %739 = vmatmul.bf16.gmra.mxu0 %v726
        %v740 = vpop.f32.mrf.mxu0
        %v741 = vadd.f32 0.0, %v740
        %v742 = vpop.f32.mrf.mxu0
        %v743 = vadd.f32 0.0, %v742
        %744 = vdwg.mxu0
        %v745 = vsel %vm378, %v741, -inf
        %746 = vmax.xlane.f32.xlu0 %v745
        %v747 = vpop.xlane.xlu0 %746
        %v748 = vsel %vm378, %v743, -inf
        %749 = vmax.xlane.f32.xlu0 %v748
        %v750 = vpop.xlane.xlu0 %749
        %v751 = vsub.f32 %v741, %v747
        %v752 = vsub.f32 %v743, %v750
        %v753 = vmul.f32 %v751, 1.442695
        %v754 = vpow.pop %v753
        %v755 = vmul.f32 %v752, 1.442695
        %v756 = vpow.pop %v755
        %v757 = vsel %vm378, %v754, 0.0
        %758 = vadd.xlane.f32.xlu0 %v757
        %v759 = vpop.xlane.xlu0 %758
        %v760 = vsel %vm378, %v756, 0.0
        %761 = vadd.xlane.f32.xlu0 %v760
        %v762 = vpop.xlane.xlu0 %761
        %v763 = vrcp.pop %v759
        %v764 = vrcp.pop %v762
        %v765 = vmul.f32 %v754, %v763
        %v766 = vmul.f32 %v756, %v764
        %v767 = vpack.c.bf16 %v766, %v765
        %v770 = vunpack.c.l.b16 %v714
        %v771 = vunpack.c.l.b16 %v715
        %v772 = vpack.c.b16 %v771, %v770
        %773 = vrot.lane.b32.xlu0 %v772, 96
        %v774 = vpop.permute.xlu0 %773
        %v777 = vsel %vm378, %v767, 0
        %779 = vmatpush.bf16.msra.mxu0 0
        %780 = vmatpush.bf16.msra.mxu0 0
        %781 = vmatpush.bf16.msra.mxu0 0
        %782 = vmatpush.bf16.msra.mxu0 0
        %783 = vmatpush.bf16.msra.mxu0 0
        %784 = vmatpush.bf16.msra.mxu0 0
        %785 = vmatpush.bf16.msra.mxu0 0
        %786 = vmatpush.bf16.msra.mxu0 %v774
        %787 = vmatmul.bf16.gmra.mxu0 %v777
        %v788 = vpop.f32.mrf.mxu0
        %v789 = vadd.f32 0.0, %v788
        %v790 = vpop.f32.mrf.mxu0
        %v791 = vadd.f32 0.0, %v790
        %792 = vdwg.mxu0
        %v793 = vpack.c.bf16 %v789, %v789
        %v794 = vpack.c.bf16 %v791, %v791
        %797 = vrot.lane.b32.xlu0 %v793, 32
        %v798 = vpop.permute.xlu0 %797
        %799 = vrot.lane.b32.xlu0 %v794, 32
        %v800 = vpop.permute.xlu0 %799
        %vm803 = vcmask 322816
        %804 = vst.msk [vmem:[#allocation3] sm:$0xf] %vm803, %v798
        %805 = vst.msk [vmem:[#allocation3 + $0x4] sm:$0xf] %vm803, %v800
        %v806 = vld [vmem:[#allocation2] sm:$0xf]
        %v807 = vld [vmem:[#allocation2 + $0x8] sm:$0xf]
        %v808 = vld [vmem:[#allocation2 + $0x4] sm:$0xf]
        %v809 = vld [vmem:[#allocation2 + $0xc] sm:$0xf]
        %v812 = vunpack.c.l.b16 %v806
        %v813 = vunpack.c.l.b16 %v807
        %v814 = vpack.c.b16 %v813, %v812
        %815 = vrot.lane.b32.xlu0 %v814, 88
        %v816 = vpop.permute.xlu0 %815
        %817 = vrot.lane.b32.xlu0 %v814, 24
        %v818 = vpop.permute.xlu0 %817
        %v820 = vsel %vm357, %v816, 0
        %v823 = vsel %vm357, %v818, 0
        %825 = vmatpush.bf16.xpose.msra.mxu0 0
        %826 = vmatpush.bf16.xpose.msra.mxu0 0
        %827 = vmatpush.bf16.xpose.msra.mxu0 0
        %828 = vmatpush.bf16.xpose.msra.mxu0 0
        %829 = vmatpush.bf16.xpose.msra.mxu0 0
        %830 = vmatpush.bf16.xpose.msra.mxu0 0
        %831 = vmatpush.bf16.xpose.msra.mxu0 0
        %832 = vmatpush.bf16.xpose.msra.mxu0 %v823
        %833 = vmatmul.bf16.gmra.mxu0 %v820
        %v834 = vpop.f32.mrf.mxu0
        %v835 = vadd.f32 0.0, %v834
        %v836 = vpop.f32.mrf.mxu0
        %v837 = vadd.f32 0.0, %v836
        %838 = vdwg.mxu0
        %v839 = vsel %vm378, %v835, -inf
        %840 = vmax.xlane.f32.xlu0 %v839
        %v841 = vpop.xlane.xlu0 %840
        %v842 = vsel %vm378, %v837, -inf
        %843 = vmax.xlane.f32.xlu0 %v842
        %v844 = vpop.xlane.xlu0 %843
        %v845 = vsub.f32 %v835, %v841
        %v846 = vsub.f32 %v837, %v844
        %v847 = vmul.f32 %v845, 1.442695
        %v848 = vpow.pop %v847
        %v849 = vmul.f32 %v846, 1.442695
        %v850 = vpow.pop %v849
        %v851 = vsel %vm378, %v848, 0.0
        %852 = vadd.xlane.f32.xlu0 %v851
        %v853 = vpop.xlane.xlu0 %852
        %v854 = vsel %vm378, %v850, 0.0
        %855 = vadd.xlane.f32.xlu0 %v854
        %v856 = vpop.xlane.xlu0 %855
        %v857 = vrcp.pop %v853
        %v858 = vrcp.pop %v856
        %v859 = vmul.f32 %v848, %v857
        %v860 = vmul.f32 %v850, %v858
        %v861 = vpack.c.bf16 %v860, %v859
        %v864 = vunpack.c.l.b16 %v808
        %v865 = vunpack.c.l.b16 %v809
        %v866 = vpack.c.b16 %v865, %v864
        %867 = vrot.lane.b32.xlu0 %v866, 88
        %v868 = vpop.permute.xlu0 %867
        %v871 = vsel %vm378, %v861, 0
        %873 = vmatpush.bf16.msra.mxu0 0
        %874 = vmatpush.bf16.msra.mxu0 0
        %875 = vmatpush.bf16.msra.mxu0 0
        %876 = vmatpush.bf16.msra.mxu0 0
        %877 = vmatpush.bf16.msra.mxu0 0
        %878 = vmatpush.bf16.msra.mxu0 0
        %879 = vmatpush.bf16.msra.mxu0 0
        %880 = vmatpush.bf16.msra.mxu0 %v868
        %881 = vmatmul.bf16.gmra.mxu0 %v871
        %v882 = vpop.f32.mrf.mxu0
        %v883 = vadd.f32 0.0, %v882
        %v884 = vpop.f32.mrf.mxu0
        %v885 = vadd.f32 0.0, %v884
        %886 = vdwg.mxu0
        %v887 = vpack.c.bf16 %v883, %v883
        %v888 = vpack.c.bf16 %v885, %v885
        %891 = vrot.lane.b32.xlu0 %v887, 40
        %v892 = vpop.permute.xlu0 %891
        %893 = vrot.lane.b32.xlu0 %v888, 40
        %v894 = vpop.permute.xlu0 %893
        %vm897 = vcmask 388416
        %898 = vst.msk [vmem:[#allocation3] sm:$0xf] %vm897, %v892
        %899 = vst.msk [vmem:[#allocation3 + $0x4] sm:$0xf] %vm897, %v894
        %v900 = vld [vmem:[#allocation2] sm:$0xf]
        %v901 = vld [vmem:[#allocation2 + $0x8] sm:$0xf]
        %v902 = vld [vmem:[#allocation2 + $0x4] sm:$0xf]
        %v903 = vld [vmem:[#allocation2 + $0xc] sm:$0xf]
        %v906 = vunpack.c.l.b16 %v900
        %v907 = vunpack.c.l.b16 %v901
        %v908 = vpack.c.b16 %v907, %v906
        %909 = vrot.lane.b32.xlu0 %v908, 80
        %v910 = vpop.permute.xlu0 %909
        %911 = vrot.lane.b32.xlu0 %v908, 16
        %v912 = vpop.permute.xlu0 %911
        %v914 = vsel %vm357, %v910, 0
        %v917 = vsel %vm357, %v912, 0
        %919 = vmatpush.bf16.xpose.msra.mxu0 0
        %920 = vmatpush.bf16.xpose.msra.mxu0 0
        %921 = vmatpush.bf16.xpose.msra.mxu0 0
        %922 = vmatpush.bf16.xpose.msra.mxu0 0
        %923 = vmatpush.bf16.xpose.msra.mxu0 0
        %924 = vmatpush.bf16.xpose.msra.mxu0 0
        %925 = vmatpush.bf16.xpose.msra.mxu0 0
        %926 = vmatpush.bf16.xpose.msra.mxu0 %v917
        %927 = vmatmul.bf16.gmra.mxu0 %v914
        %v928 = vpop.f32.mrf.mxu0
        %v929 = vadd.f32 0.0, %v928
        %v930 = vpop.f32.mrf.mxu0
        %v931 = vadd.f32 0.0, %v930
        %932 = vdwg.mxu0
        %v933 = vsel %vm378, %v929, -inf
        %934 = vmax.xlane.f32.xlu0 %v933
        %v935 = vpop.xlane.xlu0 %934
        %v936 = vsel %vm378, %v931, -inf
        %937 = vmax.xlane.f32.xlu0 %v936
        %v938 = vpop.xlane.xlu0 %937
        %v939 = vsub.f32 %v929, %v935
        %v940 = vsub.f32 %v931, %v938
        %v941 = vmul.f32 %v939, 1.442695
        %v942 = vpow.pop %v941
        %v943 = vmul.f32 %v940, 1.442695
        %v944 = vpow.pop %v943
        %v945 = vsel %vm378, %v942, 0.0
        %946 = vadd.xlane.f32.xlu0 %v945
        %v947 = vpop.xlane.xlu0 %946
        %v948 = vsel %vm378, %v944, 0.0
        %949 = vadd.xlane.f32.xlu0 %v948
        %v950 = vpop.xlane.xlu0 %949
        %v951 = vrcp.pop %v947
        %v952 = vrcp.pop %v950
        %v953 = vmul.f32 %v942, %v951
        %v954 = vmul.f32 %v944, %v952
        %v955 = vpack.c.bf16 %v954, %v953
        %v958 = vunpack.c.l.b16 %v902
        %v959 = vunpack.c.l.b16 %v903
        %v960 = vpack.c.b16 %v959, %v958
        %961 = vrot.lane.b32.xlu0 %v960, 80
        %v962 = vpop.permute.xlu0 %961
        %v965 = vsel %vm378, %v955, 0
        %967 = vmatpush.bf16.msra.mxu0 0
        %968 = vmatpush.bf16.msra.mxu0 0
        %969 = vmatpush.bf16.msra.mxu0 0
        %970 = vmatpush.bf16.msra.mxu0 0
        %971 = vmatpush.bf16.msra.mxu0 0
        %972 = vmatpush.bf16.msra.mxu0 0
        %973 = vmatpush.bf16.msra.mxu0 0
        %974 = vmatpush.bf16.msra.mxu0 %v962
        %975 = vmatmul.bf16.gmra.mxu0 %v965
        %v976 = vpop.f32.mrf.mxu0
        %v977 = vadd.f32 0.0, %v976
        %v978 = vpop.f32.mrf.mxu0
        %v979 = vadd.f32 0.0, %v978
        %980 = vdwg.mxu0
        %v981 = vpack.c.bf16 %v977, %v977
        %v982 = vpack.c.bf16 %v979, %v979
        %985 = vrot.lane.b32.xlu0 %v981, 48
        %v986 = vpop.permute.xlu0 %985
        %987 = vrot.lane.b32.xlu0 %v982, 48
        %v988 = vpop.permute.xlu0 %987
        %vm991 = vcmask 454016
        %992 = vst.msk [vmem:[#allocation3] sm:$0xf] %vm991, %v986
        %993 = vst.msk [vmem:[#allocation3 + $0x4] sm:$0xf] %vm991, %v988
        %v994 = vld [vmem:[#allocation2] sm:$0xf]
        %v995 = vld [vmem:[#allocation2 + $0x8] sm:$0xf]
        %v996 = vld [vmem:[#allocation2 + $0x4] sm:$0xf]
        %v997 = vld [vmem:[#allocation2 + $0xc] sm:$0xf]
        %v1000 = vunpack.c.l.b16 %v994
        %v1001 = vunpack.c.l.b16 %v995
        %v1002 = vpack.c.b16 %v1001, %v1000
        %1003 = vrot.lane.b32.xlu0 %v1002, 72
        %v1004 = vpop.permute.xlu0 %1003
        %1005 = vrot.lane.b32.xlu0 %v1002, 8
        %v1006 = vpop.permute.xlu0 %1005
        %v1008 = vsel %vm357, %v1004, 0
        %v1011 = vsel %vm357, %v1006, 0
        %1013 = vmatpush.bf16.xpose.msra.mxu0 0
        %1014 = vmatpush.bf16.xpose.msra.mxu0 0
        %1015 = vmatpush.bf16.xpose.msra.mxu0 0
        %1016 = vmatpush.bf16.xpose.msra.mxu0 0
        %1017 = vmatpush.bf16.xpose.msra.mxu0 0
        %1018 = vmatpush.bf16.xpose.msra.mxu0 0
        %1019 = vmatpush.bf16.xpose.msra.mxu0 0
        %1020 = vmatpush.bf16.xpose.msra.mxu0 %v1011
        %1021 = vmatmul.bf16.gmra.mxu0 %v1008
        %v1022 = vpop.f32.mrf.mxu0
        %v1023 = vadd.f32 0.0, %v1022
        %v1024 = vpop.f32.mrf.mxu0
        %v1025 = vadd.f32 0.0, %v1024
        %1026 = vdwg.mxu0
        %v1027 = vsel %vm378, %v1023, -inf
        %1028 = vmax.xlane.f32.xlu0 %v1027
        %v1029 = vpop.xlane.xlu0 %1028
        %v1030 = vsel %vm378, %v1025, -inf
        %1031 = vmax.xlane.f32.xlu0 %v1030
        %v1032 = vpop.xlane.xlu0 %1031
        %v1033 = vsub.f32 %v1023, %v1029
        %v1034 = vsub.f32 %v1025, %v1032
        %v1035 = vmul.f32 %v1033, 1.442695
        %v1036 = vpow.pop %v1035
        %v1037 = vmul.f32 %v1034, 1.442695
        %v1038 = vpow.pop %v1037
        %v1039 = vsel %vm378, %v1036, 0.0
        %1040 = vadd.xlane.f32.xlu0 %v1039
        %v1041 = vpop.xlane.xlu0 %1040
        %v1042 = vsel %vm378, %v1038, 0.0
        %1043 = vadd.xlane.f32.xlu0 %v1042
        %v1044 = vpop.xlane.xlu0 %1043
        %v1045 = vrcp.pop %v1041
        %v1046 = vrcp.pop %v1044
        %v1047 = vmul.f32 %v1036, %v1045
        %v1048 = vmul.f32 %v1038, %v1046
        %v1049 = vpack.c.bf16 %v1048, %v1047
        %v1052 = vunpack.c.l.b16 %v996
        %v1053 = vunpack.c.l.b16 %v997
        %v1054 = vpack.c.b16 %v1053, %v1052
        %1055 = vrot.lane.b32.xlu0 %v1054, 72
        %v1056 = vpop.permute.xlu0 %1055
        %v1059 = vsel %vm378, %v1049, 0
        %1061 = vmatpush.bf16.msra.mxu0 0
        %1062 = vmatpush.bf16.msra.mxu0 0
        %1063 = vmatpush.bf16.msra.mxu0 0
        %1064 = vmatpush.bf16.msra.mxu0 0
        %1065 = vmatpush.bf16.msra.mxu0 0
        %1066 = vmatpush.bf16.msra.mxu0 0
        %1067 = vmatpush.bf16.msra.mxu0 0
        %1068 = vmatpush.bf16.msra.mxu0 %v1056
        %1069 = vmatmul.bf16.gmra.mxu0 %v1059
        %v1070 = vpop.f32.mrf.mxu0
        %v1071 = vadd.f32 0.0, %v1070
        %v1072 = vpop.f32.mrf.mxu0
        %v1073 = vadd.f32 0.0, %v1072
        %1074 = vdwg.mxu0
        %v1075 = vpack.c.bf16 %v1071, %v1071
        %v1076 = vpack.c.bf16 %v1073, %v1073
        %1079 = vrot.lane.b32.xlu0 %v1075, 56
        %v1080 = vpop.permute.xlu0 %1079
        %1081 = vrot.lane.b32.xlu0 %v1076, 56
        %v1082 = vpop.permute.xlu0 %1081
        %vm1085 = vcmask 519616
        %1086 = vst.msk [vmem:[#allocation3] sm:$0xf] %vm1085, %v1080
        %1087 = vst.msk [vmem:[#allocation3 + $0x4] sm:$0xf] %vm1085, %v1082
        %v1088 = vld [vmem:[#allocation3] sm:$0xf]
        %v1089 = vld [vmem:[#allocation3 + $0x4] sm:$0xf]
        %v1090 = vld [vmem:[#allocation9] sm:$0xf]
        %v1091 = vld [vmem:[#allocation9 + $0x4] sm:$0xf]
        %v1092 = vld [vmem:[#allocation9 + $0x8] sm:$0xf]
        %v1093 = vld [vmem:[#allocation9 + $0xc] sm:$0xf]
        %v1094 = vld [vmem:[#allocation9 + $0x10] sm:$0xf]
        %v1095 = vld [vmem:[#allocation9 + $0x14] sm:$0xf]
        %v1096 = vld [vmem:[#allocation9 + $0x18] sm:$0xf]
        %v1097 = vld [vmem:[#allocation9 + $0x1c] sm:$0xf]
        %v1098 = vld [vmem:[%s3] sm:$0x1]
        %v1100 = vperm.slane %v1098, 0
        %v1104 = vunpack.c.l.b16 %v1088
        %v1105 = vunpack.c.l.b16 %v1089
        %v1106 = vpack.c.b16 %v1105, %v1104
        %v1115 = vunpack.c.l.b16 %v1090
        %v1116 = vunpack.c.l.b16 %v1091
        %v1117 = vunpack.c.l.b16 %v1092
        %v1118 = vunpack.c.l.b16 %v1093
        %v1119 = vunpack.c.l.b16 %v1094
        %v1120 = vunpack.c.l.b16 %v1095
        %v1121 = vunpack.c.l.b16 %v1096
        %v1122 = vunpack.c.l.b16 %v1097
        %v1123 = vpack.c.b16 %v1116, %v1115
        %v1124 = vpack.c.b16 %v1118, %v1117
        %v1125 = vpack.c.b16 %v1120, %v1119
        %v1126 = vpack.c.b16 %v1122, %v1121
        %v1132 = vsel %vm307, %v1106, 0
        %1134 = vmatpush.bf16.msra.mxu0 0
        %1135 = vmatpush.bf16.msra.mxu0 0
        %1136 = vmatpush.bf16.msra.mxu0 0
        %1137 = vmatpush.bf16.msra.mxu0 0
        %1138 = vmatpush.bf16.msra.mxu0 %v1126
        %1139 = vmatpush.bf16.msra.mxu0 %v1125
        %1140 = vmatpush.bf16.msra.mxu0 %v1124
        %1141 = vmatpush.bf16.msra.mxu0 %v1123
        %1142 = vmatmul.bf16.gmra.mxu0 %v1132
        %v1143 = vpop.f32.mrf.mxu0
        %v1144 = vadd.f32 %v1100, %v1143
        %v1145 = vpop.f32.mrf.mxu0
        %v1146 = vadd.f32 %v1100, %v1145
        %1147 = vdwg.mxu0
        %1148 = vst.msk [vmem:[%s250] sm:$0xff] %vm307, %v1144
        %1149 = vst.msk [vmem:[%s250 + $0x8] sm:$0xff] %vm307, %v1146
        %s1150 = sand.u32 %s119, 1
        %s1151 = scalar_lea.sflag [#allocation6], %s1150
        %s1152 = sand.u32 %s119, 1
        %s1153 = smul.addr %s1152, 16
        %s1154 = scalar_lea.vmem [#allocation10], %s1153
        // Predicated region
        $region49: #{tpu_custom_call.1} parent=35 // pred_check
          %p1155 = pneg %p129
        $region50: #{tpu_custom_call.1} parent=35 // pred_check_branch
          %1157 = sbr.rel (%p1155) target = $region52
        $region51: #{tpu_custom_call.1} parent=35 // pred_region
          %1159 = vsyncadd %s1151, 0
          %s1160 = smul.addr %s22, 2
          %s1161 = smul.addr %s1160, 8
          %s1162 = scalar_lea.hbm %s4, %s1161
          %s1163 = sshll.u32 %s1154, 4
          %s1164 = int_to_ptr.vmem [resolvable:$true] %s1163
          %s1165 = sshll.u32 %s1162, 4
          %s1166 = int_to_ptr.hbm [resolvable:$true] %s1165
          %1171 = dma.vmem_to_hbm [thread:$0]  %s1164, 256, %s1166, %s1151, 128, 128, 8
        $region52: #{tpu_custom_call.1} parent=35 // pred_fallthru
          _
      $region36: #{tpu_custom_call.1} parent=5 // pred_fallthru
        _
      %p1172 = scmp.le.s32.totalorder 2, %s17
      // Predicated region
      $region53: #{tpu_custom_call.1} parent=5 // pred_check
        %p1173 = pneg %p1172
      $region54: #{tpu_custom_call.1} parent=5 // pred_check_branch
        %1175 = sbr.rel (%p1173) target = $region56
      $region55: #{tpu_custom_call.1} parent=5 // pred_region
        %s1176 = ssub.s32 %s17, 2
        // Predicated region
        $region57: #{tpu_custom_call.1} parent=55 // pred_check
          %p1177 = pneg %p135
        $region58: #{tpu_custom_call.1} parent=55 // pred_check_branch
          %1179 = sbr.rel (%p1177) target = $region60
        $region59: #{tpu_custom_call.1} parent=55 // pred_region
          %s1180 = sand.u32 %s120, 1
          %s1181 = scalar_lea.sflag [#allocation6], %s1180
          %s1182 = sand.u32 %s120, 1
          %s1183 = smul.addr %s1182, 16
          %s1184 = scalar_lea.vmem [#allocation10], %s1183
          %1186 = dma.done %s1181, 256
        $region60: #{tpu_custom_call.1} parent=55 // pred_fallthru
          _
      $region56: #{tpu_custom_call.1} parent=5 // pred_fallthru
        _
    $region6: #{tpu_custom_call.1} parent=1 // loop_footer
      %s21 = sadd.s32 1, %s17
    $region7: #{tpu_custom_call.1} parent=1 // loop_footer_branch
      %16 = sbr.rel target = $region3
    $region8: #{tpu_custom_call.1} parent=1 // loop_exit
      _
    %1187 = vsyncpa [#allocation5], 1
    %s1188 = scalar_lea.sflag [#allocation5], 1
    %1189 = vsyncpa %s1188, 1
    %1190 = vsyncpa [#allocation8], 1
    %1191 = vsyncpa [#allocation6], 1
    %s1192 = scalar_lea.sflag [#allocation6], 1
    %1193 = vsyncpa %s1192, 1

</llo_original>
